<compile_context>
chip_gen: v5e
topology: v5e:2x2
jax: 0.10.0
libtpu: 0.0.40
codegen_flags: <defaults>
</compile_context>

<pallas_src>
import functools
import math

import jax
import jax.numpy as jnp
from jax.experimental import pallas as pl
from jax.experimental.pallas import tpu as pltpu


# Safe on every chip generation at these tile sizes; re-derive together with
# the batch tile for production shapes (~48 MiB on v7x, up to ~100 MiB v5e/v6e).
_VMEM_LIMIT = 32 * 1024 * 1024


def _round_up(x, m):
    return ((x + m - 1) // m) * m


def _batch_tile(b):
    # batch tile: fill sublanes when possible, always divides B
    return math.gcd(b, 8)


# ---------------------------------------------------------------------------
# Kernel 1: one bidirectional GRU layer (batch_first, PyTorch gate order r,z,n)
# ---------------------------------------------------------------------------
def _bigru_layer_kernel(H,
                        x_ref,     # (TB, L, Din)            f32
                        wih_ref,   # (Din, 3P)               bf16, gate blocks padded to P lanes
                        whh_ref,   # (P, 3P)                 f32, block-diag fwd/bwd per gate
                        bih_ref,   # (1, 3P)                 f32, b_ih + b_hh(r,z) folded in
                        bhn_ref,   # (1, P)                  f32, b_hh_n only
                        out_ref):  # (TB, L, P)              f32, [h_f | h_b | 0 pad]
    TB, L, Din = x_ref.shape
    P = whh_ref.shape[0]
    G3 = 3 * P

    # Hoisted input projection: one bf16 MXU matmul for all timesteps and both
    # directions (f32 accumulate); only h @ Whh stays inside the recurrence.
    x_flat = x_ref[...].reshape(TB * L, Din).astype(jnp.bfloat16)
    gi = jnp.dot(x_flat, wih_ref[...], preferred_element_type=jnp.float32)
    gi = (gi + bih_ref[...]).reshape(TB, L, G3)

    whh = whh_ref[...]
    bhn = jnp.broadcast_to(bhn_ref[...], (TB, P))   # hoisted: no per-step broadcast

    # lane masks (computed once, outside the loop); fwd half of every padded
    # gate block is lanes [0, H)
    laneP = jax.lax.broadcasted_iota(jnp.int32, (1, P), 1)
    fwd_mask_gates = jnp.concatenate([laneP, laneP, laneP], axis=1) < H   # (1, 3P)
    lane_out = jax.lax.broadcasted_iota(jnp.int32, (1, 1, P), 2)
    fwd_mask_out = lane_out < H                                           # (1, 1, P)

    h = jnp.zeros((TB, P), jnp.float32)   # [h_fwd | h_bwd | 0 pad], padding stays 0
    states = []

    # Static unroll: L is small here.
    # TODO(synk): for large L switch to lax.fori_loop(unroll=2-4) writing rows
    # into a VMEM scratch to bound live ranges.
    for s in range(L):
        # one fused recurrent matmul for both directions (block-diagonal Whh)
        gh = jnp.dot(h, whh, preferred_element_type=jnp.float32)          # (TB, 3P)
        # fwd lanes consume x[t=s], bwd lanes consume x[t=L-1-s]
        gi_t = jnp.where(fwd_mask_gates, gi[:, s, :], gi[:, L - 1 - s, :])
        r = jax.nn.sigmoid(gi_t[:, 0:P] + gh[:, 0:P])
        z = jax.nn.sigmoid(gi_t[:, P:2 * P] + gh[:, P:2 * P])
        n = jnp.tanh(gi_t[:, 2 * P:] + r * (gh[:, 2 * P:] + bhn))
        h = (1.0 - z) * n + z * h
        states.append(h)

    # Single bulk lane-dense store: fwd lanes in time order, bwd lanes reversed
    # back into time order (list reversal is compile-time).
    s_fwd = jnp.stack(states, axis=1)          # (TB, L, P)
    s_bwd = jnp.stack(states[::-1], axis=1)    # (TB, L, P)
    out_ref[...] = jnp.where(fwd_mask_out, s_fwd, s_bwd)


def bigru_layer(x, lay, H):
    """x: (B, L, Din) -> (B, L, P) with lanes [0:H]=fwd, [H:2H]=bwd, rest 0."""
    B, L, Din = x.shape
    P = lay['whh'].shape[0]
    TB = _batch_tile(B)
    kernel = functools.partial(_bigru_layer_kernel, H)
    return pl.pallas_call(
        kernel,
        out_shape=jax.ShapeDtypeStruct((B, L, P), jnp.float32),
        grid=(B // TB,),
        in_specs=[
            pl.BlockSpec((TB, L, Din), lambda b: (b, 0, 0)),
            pl.BlockSpec((Din, 3 * P), lambda b: (0, 0)),
            pl.BlockSpec((P, 3 * P), lambda b: (0, 0)),
            pl.BlockSpec((1, 3 * P), lambda b: (0, 0)),
            pl.BlockSpec((1, P), lambda b: (0, 0)),
        ],
        out_specs=pl.BlockSpec((TB, L, P), lambda b: (b, 0, 0)),
        compiler_params=pltpu.CompilerParams(
            dimension_semantics=("parallel",),
            vmem_limit_bytes=_VMEM_LIMIT),
    )(x, lay['wih'], lay['whh'], lay['bih'], lay['bhn'])


# ---------------------------------------------------------------------------
# Kernel 2: fc1_concept + concept attention + word attention + classifier
# ---------------------------------------------------------------------------
def _attn_classifier_kernel(x_ref,      # (TB, L, D)   f32
                            gru_ref,    # (TB, L, P)   f32 (padded GRU output)
                            cg_ref,     # (TB, L, K, D) f32
                            wfc1_ref,   # (P, D)       bf16 (rows >=2H are zero)
                            bfc1_ref,   # (1, D)
                            wattx_ref,  # (1, D)
                            wattc_ref,  # (1, D)
                            batt_ref,   # (1, 1)
                            woutx_ref,  # (D, C)
                            woutc_ref,  # (D, C)
                            bout_ref,   # (1, C)
                            out_ref):   # (TB, 1, C)
    TB, L, D = x_ref.shape
    P = gru_ref.shape[2]
    K = cg_ref.shape[2]
    N = TB * L

    # fc1_concept on the MXU (bf16 operands, f32 accumulate)
    g = gru_ref[...].reshape(N, P).astype(jnp.bfloat16)
    ctx = jnp.dot(g, wfc1_ref[...],
                  preferred_element_type=jnp.float32) + bfc1_ref[...]      # (N, D)

    # per-word concept attention (softmax over K concepts) — VPU multiply +
    # reduce (no M=1 / K=4 MXU push/pop, no lane relayout for the weights)
    cg = cg_ref[...].reshape(N, K, D)
    att = jnp.sum(cg * ctx[:, None, :], axis=-1, keepdims=True)            # (N, K, 1)
    att = att - jnp.max(att, axis=1, keepdims=True)
    att = jnp.exp(att)
    att = att * pl.reciprocal(jnp.sum(att, axis=1, keepdims=True), approx=True)
    concepts = jnp.sum(att * cg, axis=1)                                   # (N, D)

    # fc2_attention split into x / concept halves (no concat) as VPU
    # multiply + lane reduce (output width is 1), then tanh + softmax over L
    x2 = x_ref[...].reshape(N, D)
    score = (jnp.sum(x2 * wattx_ref[...], axis=-1, keepdims=True)
             + jnp.sum(concepts * wattc_ref[...], axis=-1, keepdims=True)
             + batt_ref[...])                                              # (N, 1)
    score = jnp.tanh(score).reshape(TB, L, 1)
    score = score - jnp.max(score, axis=1, keepdims=True)
    w = jnp.exp(score)
    w = w * pl.reciprocal(jnp.sum(w, axis=1, keepdims=True), approx=True)  # (TB, L, 1)

    # attention pooling of both halves (VPU multiply + sublane reduce)
    pooled_x = jnp.sum(w * x_ref[...], axis=1)                             # (TB, D)
    pooled_c = jnp.sum(w * concepts.reshape(TB, L, D), axis=1)             # (TB, D)

    # fc_output (split halves) + exact final softmax over classes
    logits = (jnp.dot(pooled_x, woutx_ref[...], preferred_element_type=jnp.float32)
              + jnp.dot(pooled_c, woutc_ref[...], preferred_element_type=jnp.float32)
              + bout_ref[...])                                             # (TB, C)
    logits = logits - jnp.max(logits, axis=1, keepdims=True)
    p = jnp.exp(logits)
    p = p / jnp.sum(p, axis=1, keepdims=True)
    out_ref[...] = p[:, None, :]


def attention_classifier(x, h, cg, params):
    B, L, D = x.shape
    P = h.shape[-1]
    K = cg.shape[2]
    C = params['b_out'].shape[-1]
    TB = _batch_tile(B)
    out = pl.pallas_call(
        _attn_classifier_kernel,
        out_shape=jax.ShapeDtypeStruct((B, 1, C), jnp.float32),
        grid=(B // TB,),
        in_specs=[
            pl.BlockSpec((TB, L, D), lambda b: (b, 0, 0)),
            pl.BlockSpec((TB, L, P), lambda b: (b, 0, 0)),
            pl.BlockSpec((TB, L, K, D), lambda b: (b, 0, 0, 0)),
            pl.BlockSpec((P, D), lambda b: (0, 0)),
            pl.BlockSpec((1, D), lambda b: (0, 0)),
            pl.BlockSpec((1, D), lambda b: (0, 0)),
            pl.BlockSpec((1, D), lambda b: (0, 0)),
            pl.BlockSpec((1, 1), lambda b: (0, 0)),
            pl.BlockSpec((D, C), lambda b: (0, 0)),
            pl.BlockSpec((D, C), lambda b: (0, 0)),
            pl.BlockSpec((1, C), lambda b: (0, 0)),
        ],
        out_specs=pl.BlockSpec((TB, 1, C), lambda b: (b, 0, 0)),
        compiler_params=pltpu.CompilerParams(
            dimension_semantics=("parallel",),
            vmem_limit_bytes=_VMEM_LIMIT),
    )(x, h, cg,
      params['w_fc1'], params['b_fc1'],
      params['w_att_x'], params['w_att_c'], params['b_att'],
      params['w_out_x'], params['w_out_c'], params['b_out'])
    return out.reshape(B, C)


# ---------------------------------------------------------------------------
# Parameter init (deterministic, synthetic) — weights stored kernel-ready
# (pre-transposed, gate blocks padded to 128 lanes, fwd/bwd fused, biases
#  folded, attention weights split into x / concept halves)
# ---------------------------------------------------------------------------
def init_params(key, vocab_size, word_dim, hidden, num_layers, n_classes, k_concepts):
    H, D = hidden, word_dim
    P = _round_up(2 * H, 128)
    s = 0.1
    keys = iter(jax.random.split(key, 2 + 8 * num_layers + 6))
    nxt = lambda: next(keys)

    params = {}
    emb = jax.random.normal(nxt(), (vocab_size + 2, D), jnp.float32) * s
    params['embedding'] = emb.at[vocab_size + 1].set(0.0)   # padding_idx = VOCAB_SIZE + 1

    # Dense per-vocab concept bank standing in for the python-dict concept lookup.
    # TODO(synk): idx_to_word / concept_vectors dict lookup with np.random
    # fallback has no Pallas equivalent; replaced by a deterministic dense bank.
    cb = jax.random.normal(nxt(), (vocab_size + 2, k_concepts, D), jnp.float32) * s
    params['concept_bank'] = cb.at[vocab_size + 1].set(0.0)

    layers = []
    for layer in range(num_layers):
        din_real = D if layer == 0 else 2 * H
        din = D if layer == 0 else P
        wih_f = jax.random.normal(nxt(), (3 * H, din_real), jnp.float32) * s
        whh_f = jax.random.normal(nxt(), (3 * H, H), jnp.float32) * s
        bih_f = jax.random.normal(nxt(), (3 * H,), jnp.float32) * s
        bhh_f = jax.random.normal(nxt(), (3 * H,), jnp.float32) * s
        wih_b = jax.random.normal(nxt(), (3 * H, din_real), jnp.float32) * s
        whh_b = jax.random.normal(nxt(), (3 * H, H), jnp.float32) * s
        bih_b = jax.random.normal(nxt(), (3 * H,), jnp.float32) * s
        bhh_b = jax.random.normal(nxt(), (3 * H,), jnp.float32) * s

        wih = jnp.zeros((din, 3 * P), jnp.float32)
        whh = jnp.zeros((P, 3 * P), jnp.float32)
        bih = jnp.zeros((1, 3 * P), jnp.float32)
        bhn = jnp.zeros((1, P), jnp.float32)
        for g in range(3):                       # PyTorch gate order: r, z, n
            rows = slice(g * H, (g + 1) * H)
            c0 = g * P
            wih = wih.at[:din_real, c0:c0 + H].set(wih_f[rows].T)
            wih = wih.at[:din_real, c0 + H:c0 + 2 * H].set(wih_b[rows].T)
            whh = whh.at[:H, c0:c0 + H].set(whh_f[rows].T)
            whh = whh.at[H:2 * H, c0 + H:c0 + 2 * H].set(whh_b[rows].T)
            # fold b_hh_r / b_hh_z into the hoisted input bias; b_hh_n must
            # stay inside the r-gated term (PyTorch GRU semantics).
            bf = bih_f[rows] + (bhh_f[rows] if g < 2 else 0.0)
            bb = bih_b[rows] + (bhh_b[rows] if g < 2 else 0.0)
            bih = bih.at[0, c0:c0 + H].set(bf)
            bih = bih.at[0, c0 + H:c0 + 2 * H].set(bb)
        bhn = bhn.at[0, :H].set(bhh_f[2 * H:])
        bhn = bhn.at[0, H:2 * H].set(bhh_b[2 * H:])

        layers.append({
            'wih': wih.astype(jnp.bfloat16),   # bf16 MXU operand, f32 accumulate
            'whh': whh,                        # (P, 3P) block-diagonal, f32
            'bih': bih,                        # (1, 3P)
            'bhn': bhn,                        # (1, P)
        })
    params['gru'] = layers

    # fc1_concept: Linear(2H, D), stored transposed and row-padded to P
    w_fc1 = jax.random.normal(nxt(), (D, 2 * H), jnp.float32) * s
    params['w_fc1'] = jnp.zeros((P, D), jnp.float32).at[:2 * H, :].set(w_fc1.T) \
                         .astype(jnp.bfloat16)
    params['b_fc1'] = (jax.random.normal(nxt(), (D,), jnp.float32) * s)[None, :]

    # fc2_attention: Linear(2D, 1) split into x / concept halves (no concat)
    w_att = jax.random.normal(nxt(), (1, 2 * D), jnp.float32) * s
    params['w_att_x'] = w_att[:, :D]
    params['w_att_c'] = w_att[:, D:]
    params['b_att'] = (jax.random.normal(nxt(), (1,), jnp.float32) * s)[None, :]

    # fc_output: Linear(2D, C) split into x / concept halves, transposed
    w_out = jax.random.normal(nxt(), (n_classes, 2 * D), jnp.float32) * s
    params['w_out_x'] = w_out[:, :D].T
    params['w_out_c'] = w_out[:, D:].T
    params['b_out'] = (jax.random.normal(nxt(), (n_classes,), jnp.float32) * s)[None, :]
    return params


# ---------------------------------------------------------------------------
# Forward wrapper
# ---------------------------------------------------------------------------
@functools.partial(jax.jit, static_argnames=('hidden',))
def forward(params, inp, *, hidden):
    # glue gathers (embedding lookup + per-token concept gather), batch-major
    x = jnp.take(params['embedding'], inp, axis=0)        # (B, L, D)
    cg = jnp.take(params['concept_bank'], inp, axis=0)    # (B, L, K, D)

    # stacked bidirectional GRU, one batch-tiled Pallas kernel per layer
    h = x
    for lay in params['gru']:
        h = bigru_layer(h, lay, hidden)                   # (B, L, P)

    # fc1_concept + concept attention + word attention + classifier
    return attention_classifier(x, h, cg, params)         # (B, C)


if __name__ == "__main__":
    VOCAB_SIZE = 20
    WORD_DIM = 64
    HIDDEN = 32
    NUM_LAYERS = 1
    NUM_CLASSES = 3
    K_CONCEPTS = 4
    BATCH = 2
    MAX_SENT_LEN = 8

    key = jax.random.PRNGKey(0)
    pkey, ikey = jax.random.split(key)
    params = init_params(pkey, VOCAB_SIZE, WORD_DIM, HIDDEN,
                         NUM_LAYERS, NUM_CLASSES, K_CONCEPTS)
    inp = jax.random.randint(ikey, (BATCH, MAX_SENT_LEN), 0, VOCAB_SIZE,
                             dtype=jnp.int32)

    out = forward(params, inp, hidden=HIDDEN)
    out = jax.block_until_ready(out)

    assert out.shape == (BATCH, NUM_CLASSES)
    assert bool(jnp.all(jnp.isfinite(out)))
    assert bool(jnp.allclose(jnp.sum(out, axis=1), 1.0, atol=1e-4))
    print("KERNEL_OK")
</pallas_src>

<mosaic_0001>
module attributes {stable_mosaic.version = 11 : i64} {
  func.func @_attn_classifier_kernel(%arg0: i32, %arg1: memref<2x8x64xf32, #tpu.memory_space<vmem>>, %arg2: memref<2x8x128xf32, #tpu.memory_space<vmem>>, %arg3: memref<2x8x4x64xf32, #tpu.memory_space<vmem>>, %arg4: memref<128x64xbf16, #tpu.memory_space<vmem>>, %arg5: memref<1x64xf32, #tpu.memory_space<vmem>>, %arg6: memref<1x64xf32, #tpu.memory_space<vmem>>, %arg7: memref<1x64xf32, #tpu.memory_space<vmem>>, %arg8: memref<1x1xf32, #tpu.memory_space<vmem>>, %arg9: memref<64x3xf32, #tpu.memory_space<vmem>>, %arg10: memref<64x3xf32, #tpu.memory_space<vmem>>, %arg11: memref<1x3xf32, #tpu.memory_space<vmem>>, %arg12: memref<2x1x3xf32, #tpu.memory_space<vmem>>) attributes {dimension_semantics = [#tpu.dimension_semantics<parallel>], iteration_bounds = array<i64: 1>, scalar_prefetch = 0 : i64, scratch_operands = 0 : i64, tpu.core_type = #tpu.core_type<tc>, window_params = [{transform_indices = @transform_0, window_bounds = array<i64: 2, 8, 64>}, {transform_indices = @transform_1, window_bounds = array<i64: 2, 8, 128>}, {transform_indices = @transform_2, window_bounds = array<i64: 2, 8, 4, 64>}, {pipeline_mode = #tpu.pipeline_mode<synchronous>, transform_indices = @transform_3, window_bounds = array<i64: 128, 64>}, {pipeline_mode = #tpu.pipeline_mode<synchronous>, transform_indices = @transform_4, window_bounds = array<i64: 1, 64>}, {pipeline_mode = #tpu.pipeline_mode<synchronous>, transform_indices = @transform_5, window_bounds = array<i64: 1, 64>}, {pipeline_mode = #tpu.pipeline_mode<synchronous>, transform_indices = @transform_6, window_bounds = array<i64: 1, 64>}, {pipeline_mode = #tpu.pipeline_mode<synchronous>, transform_indices = @transform_7, window_bounds = array<i64: 1, 1>}, {pipeline_mode = #tpu.pipeline_mode<synchronous>, transform_indices = @transform_8, window_bounds = array<i64: 64, 3>}, {pipeline_mode = #tpu.pipeline_mode<synchronous>, transform_indices = @transform_9, window_bounds = array<i64: 64, 3>}, {pipeline_mode = #tpu.pipeline_mode<synchronous>, transform_indices = @transform_10, window_bounds = array<i64: 1, 3>}, {transform_indices = @transform_11, window_bounds = array<i64: 2, 1, 3>}]} {
    %c0 = arith.constant 0 : index
    %c0_0 = arith.constant 0 : index
    %c0_1 = arith.constant 0 : index
    %0 = vector.load %arg2[%c0, %c0_0, %c0_1] : memref<2x8x128xf32, #tpu.memory_space<vmem>>, vector<2x8x128xf32>
    %1 = vector.shape_cast %0 : vector<2x8x128xf32> to vector<16x128xf32>
    %2 = arith.truncf %1 : vector<16x128xf32> to vector<16x128xbf16>
    %c0_2 = arith.constant 0 : index
    %c0_3 = arith.constant 0 : index
    %3 = vector.load %arg4[%c0_2, %c0_3] : memref<128x64xbf16, #tpu.memory_space<vmem>>, vector<128x64xbf16>
    %cst = arith.constant dense<0.000000e+00> : vector<16x64xf32>
    %4 = tpu.matmul %2, %3, %cst {dimension_numbers = #tpu.dot_dimension_numbers<[1], [0], [0], [1], [0, 0, 1, 1], [], []>} : vector<16x128xbf16>, vector<128x64xbf16>, vector<16x64xf32> -> vector<16x64xf32>
    %c0_4 = arith.constant 0 : index
    %c0_5 = arith.constant 0 : index
    %5 = vector.load %arg5[%c0_4, %c0_5] : memref<1x64xf32, #tpu.memory_space<vmem>>, vector<1x64xf32>
    %6 = vector.broadcast %5 : vector<1x64xf32> to vector<16x64xf32>
    %7 = arith.addf %4, %6 : vector<16x64xf32>
    %c0_6 = arith.constant 0 : index
    %c0_7 = arith.constant 0 : index
    %c0_8 = arith.constant 0 : index
    %c0_9 = arith.constant 0 : index
    %8 = vector.load %arg3[%c0_6, %c0_7, %c0_8, %c0_9] : memref<2x8x4x64xf32, #tpu.memory_space<vmem>>, vector<2x8x4x64xf32>
    %9 = vector.shape_cast %8 : vector<2x8x4x64xf32> to vector<16x4x64xf32>
    %10 = vector.shape_cast %7 : vector<16x64xf32> to vector<16x1x64xf32>
    %11 = vector.broadcast %10 : vector<16x1x64xf32> to vector<16x4x64xf32>
    %12 = arith.mulf %9, %11 : vector<16x4x64xf32>
    %cst_10 = arith.constant dense<0.000000e+00> : vector<16x4xf32>
    %13 = vector.multi_reduction <add>, %12, %cst_10 [2] : vector<16x4x64xf32> to vector<16x4xf32>
    %14 = vector.shape_cast %13 : vector<16x4xf32> to vector<16x4x1xf32>
    %cst_11 = arith.constant dense<0xFF800000> : vector<16x1xf32>
    %15 = vector.multi_reduction <maximumf>, %14, %cst_11 [1] : vector<16x4x1xf32> to vector<16x1xf32>
    %16 = vector.shape_cast %15 : vector<16x1xf32> to vector<16x1x1xf32>
    %17 = vector.broadcast %16 : vector<16x1x1xf32> to vector<16x4x1xf32>
    %18 = arith.subf %14, %17 : vector<16x4x1xf32>
    %19 = math.exp %18 : vector<16x4x1xf32>
    %cst_12 = arith.constant dense<0.000000e+00> : vector<16x1xf32>
    %20 = vector.multi_reduction <add>, %19, %cst_12 [1] : vector<16x4x1xf32> to vector<16x1xf32>
    %21 = vector.shape_cast %20 : vector<16x1xf32> to vector<16x1x1xf32>
    %22 = tpu.reciprocal %21 {approx = true} : vector<16x1x1xf32> -> vector<16x1x1xf32>
    %23 = vector.broadcast %22 : vector<16x1x1xf32> to vector<16x4x1xf32>
    %24 = arith.mulf %19, %23 : vector<16x4x1xf32>
    %25 = vector.broadcast %24 : vector<16x4x1xf32> to vector<16x4x64xf32>
    %26 = arith.mulf %25, %9 : vector<16x4x64xf32>
    %cst_13 = arith.constant dense<0.000000e+00> : vector<16x64xf32>
    %27 = vector.multi_reduction <add>, %26, %cst_13 [1] : vector<16x4x64xf32> to vector<16x64xf32>
    %c0_14 = arith.constant 0 : index
    %c0_15 = arith.constant 0 : index
    %c0_16 = arith.constant 0 : index
    %28 = vector.load %arg1[%c0_14, %c0_15, %c0_16] : memref<2x8x64xf32, #tpu.memory_space<vmem>>, vector<2x8x64xf32>
    %29 = vector.shape_cast %28 : vector<2x8x64xf32> to vector<16x64xf32>
    %c0_17 = arith.constant 0 : index
    %c0_18 = arith.constant 0 : index
    %30 = vector.load %arg6[%c0_17, %c0_18] : memref<1x64xf32, #tpu.memory_space<vmem>>, vector<1x64xf32>
    %31 = vector.broadcast %30 : vector<1x64xf32> to vector<16x64xf32>
    %32 = arith.mulf %29, %31 : vector<16x64xf32>
    %cst_19 = arith.constant dense<0.000000e+00> : vector<16xf32>
    %33 = vector.multi_reduction <add>, %32, %cst_19 [1] : vector<16x64xf32> to vector<16xf32>
    %34 = vector.shape_cast %33 : vector<16xf32> to vector<16x1xf32>
    %c0_20 = arith.constant 0 : index
    %c0_21 = arith.constant 0 : index
    %35 = vector.load %arg7[%c0_20, %c0_21] : memref<1x64xf32, #tpu.memory_space<vmem>>, vector<1x64xf32>
    %36 = vector.broadcast %35 : vector<1x64xf32> to vector<16x64xf32>
    %37 = arith.mulf %27, %36 : vector<16x64xf32>
    %cst_22 = arith.constant dense<0.000000e+00> : vector<16xf32>
    %38 = vector.multi_reduction <add>, %37, %cst_22 [1] : vector<16x64xf32> to vector<16xf32>
    %39 = vector.shape_cast %38 : vector<16xf32> to vector<16x1xf32>
    %40 = arith.addf %34, %39 : vector<16x1xf32>
    %c0_23 = arith.constant 0 : index
    %c0_24 = arith.constant 0 : index
    %41 = vector.load %arg8[%c0_23, %c0_24] : memref<1x1xf32, #tpu.memory_space<vmem>>, vector<1x1xf32>
    %42 = vector.broadcast %41 : vector<1x1xf32> to vector<16x1xf32>
    %43 = arith.addf %40, %42 : vector<16x1xf32>
    %44 = math.tanh %43 : vector<16x1xf32>
    %45 = vector.shape_cast %44 : vector<16x1xf32> to vector<2x8x1xf32>
    %cst_25 = arith.constant dense<0xFF800000> : vector<2x1xf32>
    %46 = vector.multi_reduction <maximumf>, %45, %cst_25 [1] : vector<2x8x1xf32> to vector<2x1xf32>
    %47 = vector.shape_cast %46 : vector<2x1xf32> to vector<2x1x1xf32>
    %48 = vector.broadcast %47 : vector<2x1x1xf32> to vector<2x8x1xf32>
    %49 = arith.subf %45, %48 : vector<2x8x1xf32>
    %50 = math.exp %49 : vector<2x8x1xf32>
    %cst_26 = arith.constant dense<0.000000e+00> : vector<2x1xf32>
    %51 = vector.multi_reduction <add>, %50, %cst_26 [1] : vector<2x8x1xf32> to vector<2x1xf32>
    %52 = vector.shape_cast %51 : vector<2x1xf32> to vector<2x1x1xf32>
    %53 = tpu.reciprocal %52 {approx = true} : vector<2x1x1xf32> -> vector<2x1x1xf32>
    %54 = vector.broadcast %53 : vector<2x1x1xf32> to vector<2x8x1xf32>
    %55 = arith.mulf %50, %54 : vector<2x8x1xf32>
    %c0_27 = arith.constant 0 : index
    %c0_28 = arith.constant 0 : index
    %c0_29 = arith.constant 0 : index
    %56 = vector.load %arg1[%c0_27, %c0_28, %c0_29] : memref<2x8x64xf32, #tpu.memory_space<vmem>>, vector<2x8x64xf32>
    %57 = vector.broadcast %55 : vector<2x8x1xf32> to vector<2x8x64xf32>
    %58 = arith.mulf %57, %56 : vector<2x8x64xf32>
    %cst_30 = arith.constant dense<0.000000e+00> : vector<2x64xf32>
    %59 = vector.multi_reduction <add>, %58, %cst_30 [1] : vector<2x8x64xf32> to vector<2x64xf32>
    %60 = vector.shape_cast %27 : vector<16x64xf32> to vector<2x8x64xf32>
    %61 = vector.broadcast %55 : vector<2x8x1xf32> to vector<2x8x64xf32>
    %62 = arith.mulf %61, %60 : vector<2x8x64xf32>
    %cst_31 = arith.constant dense<0.000000e+00> : vector<2x64xf32>
    %63 = vector.multi_reduction <add>, %62, %cst_31 [1] : vector<2x8x64xf32> to vector<2x64xf32>
    %c0_32 = arith.constant 0 : index
    %c0_33 = arith.constant 0 : index
    %64 = vector.load %arg9[%c0_32, %c0_33] : memref<64x3xf32, #tpu.memory_space<vmem>>, vector<64x3xf32>
    %cst_34 = arith.constant dense<0.000000e+00> : vector<2x3xf32>
    %65 = tpu.matmul %59, %64, %cst_34 {dimension_numbers = #tpu.dot_dimension_numbers<[1], [0], [0], [1], [0, 0, 1, 1], [], []>} : vector<2x64xf32>, vector<64x3xf32>, vector<2x3xf32> -> vector<2x3xf32>
    %c0_35 = arith.constant 0 : index
    %c0_36 = arith.constant 0 : index
    %66 = vector.load %arg10[%c0_35, %c0_36] : memref<64x3xf32, #tpu.memory_space<vmem>>, vector<64x3xf32>
    %cst_37 = arith.constant dense<0.000000e+00> : vector<2x3xf32>
    %67 = tpu.matmul %63, %66, %cst_37 {dimension_numbers = #tpu.dot_dimension_numbers<[1], [0], [0], [1], [0, 0, 1, 1], [], []>} : vector<2x64xf32>, vector<64x3xf32>, vector<2x3xf32> -> vector<2x3xf32>
    %68 = arith.addf %65, %67 : vector<2x3xf32>
    %c0_38 = arith.constant 0 : index
    %c0_39 = arith.constant 0 : index
    %69 = vector.load %arg11[%c0_38, %c0_39] : memref<1x3xf32, #tpu.memory_space<vmem>>, vector<1x3xf32>
    %70 = vector.broadcast %69 : vector<1x3xf32> to vector<2x3xf32>
    %71 = arith.addf %68, %70 : vector<2x3xf32>
    %cst_40 = arith.constant dense<0xFF800000> : vector<2xf32>
    %72 = vector.multi_reduction <maximumf>, %71, %cst_40 [1] : vector<2x3xf32> to vector<2xf32>
    %73 = vector.shape_cast %72 : vector<2xf32> to vector<2x1xf32>
    %74 = vector.broadcast %73 : vector<2x1xf32> to vector<2x3xf32>
    %75 = arith.subf %71, %74 : vector<2x3xf32>
    %76 = math.exp %75 : vector<2x3xf32>
    %cst_41 = arith.constant dense<0.000000e+00> : vector<2xf32>
    %77 = vector.multi_reduction <add>, %76, %cst_41 [1] : vector<2x3xf32> to vector<2xf32>
    %78 = vector.shape_cast %77 : vector<2xf32> to vector<2x1xf32>
    %79 = vector.broadcast %78 : vector<2x1xf32> to vector<2x3xf32>
    %80 = arith.divf %76, %79 : vector<2x3xf32>
    %81 = vector.shape_cast %80 : vector<2x3xf32> to vector<2x1x3xf32>
    %c0_42 = arith.constant 0 : index
    %c0_43 = arith.constant 0 : index
    %c0_44 = arith.constant 0 : index
    %82 = vector.load %arg12[%c0_42, %c0_43, %c0_44] : memref<2x1x3xf32, #tpu.memory_space<vmem>>, vector<2x1x3xf32>
    tpu.vector_store %arg12[%c0_42, %c0_43, %c0_44], %81 {strides = array<i32>} : memref<2x1x3xf32, #tpu.memory_space<vmem>>, vector<2x1x3xf32>,
    return
  }
  func.func @transform_0(%arg0: i32) -> (i32, i32, i32) {
    %c0_i32 = arith.constant 0 : i32
    %c0_i32_0 = arith.constant 0 : i32
    %c0_i32_1 = arith.constant 0 : i32
    return %arg0, %c0_i32, %c0_i32_0 : i32, i32, i32
  }
  func.func @transform_1(%arg0: i32) -> (i32, i32, i32) {
    %c0_i32 = arith.constant 0 : i32
    %c0_i32_0 = arith.constant 0 : i32
    %c0_i32_1 = arith.constant 0 : i32
    return %arg0, %c0_i32, %c0_i32_0 : i32, i32, i32
  }
  func.func @transform_2(%arg0: i32) -> (i32, i32, i32, i32) {
    %c0_i32 = arith.constant 0 : i32
    %c0_i32_0 = arith.constant 0 : i32
    %c0_i32_1 = arith.constant 0 : i32
    %c0_i32_2 = arith.constant 0 : i32
    return %arg0, %c0_i32, %c0_i32_0, %c0_i32_1 : i32, i32, i32, i32
  }
  func.func @transform_3(%arg0: i32) -> (i32, i32) {
    %c0_i32 = arith.constant 0 : i32
    %c0_i32_0 = arith.constant 0 : i32
    %c0_i32_1 = arith.constant 0 : i32
    return %c0_i32, %c0_i32_0 : i32, i32
  }
  func.func @transform_4(%arg0: i32) -> (i32, i32) {
    %c0_i32 = arith.constant 0 : i32
    %c0_i32_0 = arith.constant 0 : i32
    %c0_i32_1 = arith.constant 0 : i32
    return %c0_i32, %c0_i32_0 : i32, i32
  }
  func.func @transform_5(%arg0: i32) -> (i32, i32) {
    %c0_i32 = arith.constant 0 : i32
    %c0_i32_0 = arith.constant 0 : i32
    %c0_i32_1 = arith.constant 0 : i32
    return %c0_i32, %c0_i32_0 : i32, i32
  }
  func.func @transform_6(%arg0: i32) -> (i32, i32) {
    %c0_i32 = arith.constant 0 : i32
    %c0_i32_0 = arith.constant 0 : i32
    %c0_i32_1 = arith.constant 0 : i32
    return %c0_i32, %c0_i32_0 : i32, i32
  }
  func.func @transform_7(%arg0: i32) -> (i32, i32) {
    %c0_i32 = arith.constant 0 : i32
    %c0_i32_0 = arith.constant 0 : i32
    %c0_i32_1 = arith.constant 0 : i32
    return %c0_i32, %c0_i32_0 : i32, i32
  }
  func.func @transform_8(%arg0: i32) -> (i32, i32) {
    %c0_i32 = arith.constant 0 : i32
    %c0_i32_0 = arith.constant 0 : i32
    %c0_i32_1 = arith.constant 0 : i32
    return %c0_i32, %c0_i32_0 : i32, i32
  }
  func.func @transform_9(%arg0: i32) -> (i32, i32) {
    %c0_i32 = arith.constant 0 : i32
    %c0_i32_0 = arith.constant 0 : i32
    %c0_i32_1 = arith.constant 0 : i32
    return %c0_i32, %c0_i32_0 : i32, i32
  }
  func.func @transform_10(%arg0: i32) -> (i32, i32) {
    %c0_i32 = arith.constant 0 : i32
    %c0_i32_0 = arith.constant 0 : i32
    %c0_i32_1 = arith.constant 0 : i32
    return %c0_i32, %c0_i32_0 : i32, i32
  }
  func.func @transform_11(%arg0: i32) -> (i32, i32, i32) {
    %c0_i32 = arith.constant 0 : i32
    %c0_i32_0 = arith.constant 0 : i32
    %c0_i32_1 = arith.constant 0 : i32
    return %arg0, %c0_i32, %c0_i32_0 : i32, i32, i32
  }
}

module attributes {stable_mosaic.version = 11 : i64} {
  func.func @_bigru_layer_kernel(%arg0: i32, %arg1: memref<2x8x64xf32, #tpu.memory_space<vmem>>, %arg2: memref<64x384xbf16, #tpu.memory_space<vmem>>, %arg3: memref<128x384xf32, #tpu.memory_space<vmem>>, %arg4: memref<1x384xf32, #tpu.memory_space<vmem>>, %arg5: memref<1x128xf32, #tpu.memory_space<vmem>>, %arg6: memref<2x8x128xf32, #tpu.memory_space<vmem>>) attributes {dimension_semantics = [#tpu.dimension_semantics<parallel>], iteration_bounds = array<i64: 1>, scalar_prefetch = 0 : i64, scratch_operands = 0 : i64, tpu.core_type = #tpu.core_type<tc>, window_params = [{transform_indices = @transform_0, window_bounds = array<i64: 2, 8, 64>}, {pipeline_mode = #tpu.pipeline_mode<synchronous>, transform_indices = @transform_1, window_bounds = array<i64: 64, 384>}, {pipeline_mode = #tpu.pipeline_mode<synchronous>, transform_indices = @transform_2, window_bounds = array<i64: 128, 384>}, {pipeline_mode = #tpu.pipeline_mode<synchronous>, transform_indices = @transform_3, window_bounds = array<i64: 1, 384>}, {pipeline_mode = #tpu.pipeline_mode<synchronous>, transform_indices = @transform_4, window_bounds = array<i64: 1, 128>}, {transform_indices = @transform_5, window_bounds = array<i64: 2, 8, 128>}]} {
    %c0 = arith.constant 0 : index
    %c0_0 = arith.constant 0 : index
    %c0_1 = arith.constant 0 : index
    %0 = vector.load %arg1[%c0, %c0_0, %c0_1] : memref<2x8x64xf32, #tpu.memory_space<vmem>>, vector<2x8x64xf32>
    %1 = vector.shape_cast %0 : vector<2x8x64xf32> to vector<16x64xf32>
    %2 = arith.truncf %1 : vector<16x64xf32> to vector<16x64xbf16>
    %c0_2 = arith.constant 0 : index
    %c0_3 = arith.constant 0 : index
    %3 = vector.load %arg2[%c0_2, %c0_3] : memref<64x384xbf16, #tpu.memory_space<vmem>>, vector<64x384xbf16>
    %cst = arith.constant dense<0.000000e+00> : vector<16x384xf32>
    %4 = tpu.matmul %2, %3, %cst {dimension_numbers = #tpu.dot_dimension_numbers<[1], [0], [0], [1], [0, 0, 1, 1], [], []>} : vector<16x64xbf16>, vector<64x384xbf16>, vector<16x384xf32> -> vector<16x384xf32>
    %c0_4 = arith.constant 0 : index
    %c0_5 = arith.constant 0 : index
    %5 = vector.load %arg4[%c0_4, %c0_5] : memref<1x384xf32, #tpu.memory_space<vmem>>, vector<1x384xf32>
    %6 = vector.broadcast %5 : vector<1x384xf32> to vector<16x384xf32>
    %7 = arith.addf %4, %6 : vector<16x384xf32>
    %8 = vector.shape_cast %7 : vector<16x384xf32> to vector<2x8x384xf32>
    %c0_6 = arith.constant 0 : index
    %c0_7 = arith.constant 0 : index
    %9 = vector.load %arg3[%c0_6, %c0_7] : memref<128x384xf32, #tpu.memory_space<vmem>>, vector<128x384xf32>
    %c0_8 = arith.constant 0 : index
    %c0_9 = arith.constant 0 : index
    %10 = vector.load %arg5[%c0_8, %c0_9] : memref<1x128xf32, #tpu.memory_space<vmem>>, vector<1x128xf32>
    %11 = vector.shape_cast %10 : vector<1x128xf32> to vector<1x128xf32>
    %12 = vector.broadcast %11 : vector<1x128xf32> to vector<2x128xf32>
    %13 = tpu.iota {dimensions = array<i32: 1>} : vector<1x128xi32>
    %14 = tpu.concatenate %13, %13, %13 in 1 : vector<1x128xi32>, vector<1x128xi32>, vector<1x128xi32> -> vector<1x384xi32>
    %c32_i32 = arith.constant 32 : i32
    %15 = vector.broadcast %c32_i32 : i32 to vector<1x384xi32>
    %16 = arith.cmpi slt, %14, %15 : vector<1x384xi32>
    %17 = tpu.iota {dimensions = array<i32: 2>} : vector<1x1x128xi32>
    %c32_i32_10 = arith.constant 32 : i32
    %18 = vector.broadcast %c32_i32_10 : i32 to vector<1x1x128xi32>
    %19 = arith.cmpi slt, %17, %18 : vector<1x1x128xi32>
    %cst_11 = arith.constant 0.000000e+00 : f32
    %20 = vector.broadcast %cst_11 : f32 to vector<2x128xf32>
    %cst_12 = arith.constant dense<0.000000e+00> : vector<2x384xf32>
    %21 = tpu.matmul %20, %9, %cst_12 {dimension_numbers = #tpu.dot_dimension_numbers<[1], [0], [0], [1], [0, 0, 1, 1], [], []>} : vector<2x128xf32>, vector<128x384xf32>, vector<2x384xf32> -> vector<2x384xf32>
    %22 = vector.extract_strided_slice %8 {offsets = [0, 0, 0], sizes = [2, 1, 384], strides = [1, 1, 1]} : vector<2x8x384xf32> to vector<2x1x384xf32>
    %23 = vector.shape_cast %22 : vector<2x1x384xf32> to vector<2x384xf32>
    %24 = vector.extract_strided_slice %8 {offsets = [0, 7, 0], sizes = [2, 1, 384], strides = [1, 1, 1]} : vector<2x8x384xf32> to vector<2x1x384xf32>
    %25 = vector.shape_cast %24 : vector<2x1x384xf32> to vector<2x384xf32>
    %26 = vector.shape_cast %16 : vector<1x384xi1> to vector<1x384xi1>
    %27 = vector.broadcast %26 : vector<1x384xi1> to vector<2x384xi1>
    %28 = arith.select %27, %23, %25 : vector<2x384xi1>, vector<2x384xf32>
    %29 = vector.extract_strided_slice %28 {offsets = [0, 0], sizes = [2, 128], strides = [1, 1]} : vector<2x384xf32> to vector<2x128xf32>
    %30 = vector.extract_strided_slice %21 {offsets = [0, 0], sizes = [2, 128], strides = [1, 1]} : vector<2x384xf32> to vector<2x128xf32>
    %31 = arith.addf %29, %30 : vector<2x128xf32>
    %32 = arith.negf %31 : vector<2x128xf32>
    %33 = math.exp %32 : vector<2x128xf32>
    %cst_13 = arith.constant 1.000000e+00 : f32
    %34 = vector.broadcast %cst_13 : f32 to vector<2x128xf32>
    %35 = arith.addf %34, %33 : vector<2x128xf32>
    %36 = arith.divf %34, %35 : vector<2x128xf32>
    %37 = vector.extract_strided_slice %28 {offsets = [0, 128], sizes = [2, 128], strides = [1, 1]} : vector<2x384xf32> to vector<2x128xf32>
    %38 = vector.extract_strided_slice %21 {offsets = [0, 128], sizes = [2, 128], strides = [1, 1]} : vector<2x384xf32> to vector<2x128xf32>
    %39 = arith.addf %37, %38 : vector<2x128xf32>
    %40 = arith.negf %39 : vector<2x128xf32>
    %41 = math.exp %40 : vector<2x128xf32>
    %cst_14 = arith.constant 1.000000e+00 : f32
    %42 = vector.broadcast %cst_14 : f32 to vector<2x128xf32>
    %43 = arith.addf %42, %41 : vector<2x128xf32>
    %44 = arith.divf %42, %43 : vector<2x128xf32>
    %45 = vector.extract_strided_slice %28 {offsets = [0, 256], sizes = [2, 128], strides = [1, 1]} : vector<2x384xf32> to vector<2x128xf32>
    %46 = vector.extract_strided_slice %21 {offsets = [0, 256], sizes = [2, 128], strides = [1, 1]} : vector<2x384xf32> to vector<2x128xf32>
    %47 = arith.addf %46, %12 : vector<2x128xf32>
    %48 = arith.mulf %36, %47 : vector<2x128xf32>
    %49 = arith.addf %45, %48 : vector<2x128xf32>
    %50 = math.tanh %49 : vector<2x128xf32>
    %cst_15 = arith.constant 1.000000e+00 : f32
    %51 = vector.broadcast %cst_15 : f32 to vector<2x128xf32>
    %52 = arith.subf %51, %44 : vector<2x128xf32>
    %53 = arith.mulf %52, %50 : vector<2x128xf32>
    %54 = arith.mulf %44, %20 : vector<2x128xf32>
    %55 = arith.addf %53, %54 : vector<2x128xf32>
    %cst_16 = arith.constant dense<0.000000e+00> : vector<2x384xf32>
    %56 = tpu.matmul %55, %9, %cst_16 {dimension_numbers = #tpu.dot_dimension_numbers<[1], [0], [0], [1], [0, 0, 1, 1], [], []>} : vector<2x128xf32>, vector<128x384xf32>, vector<2x384xf32> -> vector<2x384xf32>
    %57 = vector.extract_strided_slice %8 {offsets = [0, 1, 0], sizes = [2, 1, 384], strides = [1, 1, 1]} : vector<2x8x384xf32> to vector<2x1x384xf32>
    %58 = vector.shape_cast %57 : vector<2x1x384xf32> to vector<2x384xf32>
    %59 = vector.extract_strided_slice %8 {offsets = [0, 6, 0], sizes = [2, 1, 384], strides = [1, 1, 1]} : vector<2x8x384xf32> to vector<2x1x384xf32>
    %60 = vector.shape_cast %59 : vector<2x1x384xf32> to vector<2x384xf32>
    %61 = vector.shape_cast %16 : vector<1x384xi1> to vector<1x384xi1>
    %62 = vector.broadcast %61 : vector<1x384xi1> to vector<2x384xi1>
    %63 = arith.select %62, %58, %60 : vector<2x384xi1>, vector<2x384xf32>
    %64 = vector.extract_strided_slice %63 {offsets = [0, 0], sizes = [2, 128], strides = [1, 1]} : vector<2x384xf32> to vector<2x128xf32>
    %65 = vector.extract_strided_slice %56 {offsets = [0, 0], sizes = [2, 128], strides = [1, 1]} : vector<2x384xf32> to vector<2x128xf32>
    %66 = arith.addf %64, %65 : vector<2x128xf32>
    %67 = arith.negf %66 : vector<2x128xf32>
    %68 = math.exp %67 : vector<2x128xf32>
    %cst_17 = arith.constant 1.000000e+00 : f32
    %69 = vector.broadcast %cst_17 : f32 to vector<2x128xf32>
    %70 = arith.addf %69, %68 : vector<2x128xf32>
    %71 = arith.divf %69, %70 : vector<2x128xf32>
    %72 = vector.extract_strided_slice %63 {offsets = [0, 128], sizes = [2, 128], strides = [1, 1]} : vector<2x384xf32> to vector<2x128xf32>
    %73 = vector.extract_strided_slice %56 {offsets = [0, 128], sizes = [2, 128], strides = [1, 1]} : vector<2x384xf32> to vector<2x128xf32>
    %74 = arith.addf %72, %73 : vector<2x128xf32>
    %75 = arith.negf %74 : vector<2x128xf32>
    %76 = math.exp %75 : vector<2x128xf32>
    %cst_18 = arith.constant 1.000000e+00 : f32
    %77 = vector.broadcast %cst_18 : f32 to vector<2x128xf32>
    %78 = arith.addf %77, %76 : vector<2x128xf32>
    %79 = arith.divf %77, %78 : vector<2x128xf32>
    %80 = vector.extract_strided_slice %63 {offsets = [0, 256], sizes = [2, 128], strides = [1, 1]} : vector<2x384xf32> to vector<2x128xf32>
    %81 = vector.extract_strided_slice %56 {offsets = [0, 256], sizes = [2, 128], strides = [1, 1]} : vector<2x384xf32> to vector<2x128xf32>
    %82 = arith.addf %81, %12 : vector<2x128xf32>
    %83 = arith.mulf %71, %82 : vector<2x128xf32>
    %84 = arith.addf %80, %83 : vector<2x128xf32>
    %85 = math.tanh %84 : vector<2x128xf32>
    %cst_19 = arith.constant 1.000000e+00 : f32
    %86 = vector.broadcast %cst_19 : f32 to vector<2x128xf32>
    %87 = arith.subf %86, %79 : vector<2x128xf32>
    %88 = arith.mulf %87, %85 : vector<2x128xf32>
    %89 = arith.mulf %79, %55 : vector<2x128xf32>
    %90 = arith.addf %88, %89 : vector<2x128xf32>
    %cst_20 = arith.constant dense<0.000000e+00> : vector<2x384xf32>
    %91 = tpu.matmul %90, %9, %cst_20 {dimension_numbers = #tpu.dot_dimension_numbers<[1], [0], [0], [1], [0, 0, 1, 1], [], []>} : vector<2x128xf32>, vector<128x384xf32>, vector<2x384xf32> -> vector<2x384xf32>
    %92 = vector.extract_strided_slice %8 {offsets = [0, 2, 0], sizes = [2, 1, 384], strides = [1, 1, 1]} : vector<2x8x384xf32> to vector<2x1x384xf32>
    %93 = vector.shape_cast %92 : vector<2x1x384xf32> to vector<2x384xf32>
    %94 = vector.extract_strided_slice %8 {offsets = [0, 5, 0], sizes = [2, 1, 384], strides = [1, 1, 1]} : vector<2x8x384xf32> to vector<2x1x384xf32>
    %95 = vector.shape_cast %94 : vector<2x1x384xf32> to vector<2x384xf32>
    %96 = vector.shape_cast %16 : vector<1x384xi1> to vector<1x384xi1>
    %97 = vector.broadcast %96 : vector<1x384xi1> to vector<2x384xi1>
    %98 = arith.select %97, %93, %95 : vector<2x384xi1>, vector<2x384xf32>
    %99 = vector.extract_strided_slice %98 {offsets = [0, 0], sizes = [2, 128], strides = [1, 1]} : vector<2x384xf32> to vector<2x128xf32>
    %100 = vector.extract_strided_slice %91 {offsets = [0, 0], sizes = [2, 128], strides = [1, 1]} : vector<2x384xf32> to vector<2x128xf32>
    %101 = arith.addf %99, %100 : vector<2x128xf32>
    %102 = arith.negf %101 : vector<2x128xf32>
    %103 = math.exp %102 : vector<2x128xf32>
    %cst_21 = arith.constant 1.000000e+00 : f32
    %104 = vector.broadcast %cst_21 : f32 to vector<2x128xf32>
    %105 = arith.addf %104, %103 : vector<2x128xf32>
    %106 = arith.divf %104, %105 : vector<2x128xf32>
    %107 = vector.extract_strided_slice %98 {offsets = [0, 128], sizes = [2, 128], strides = [1, 1]} : vector<2x384xf32> to vector<2x128xf32>
    %108 = vector.extract_strided_slice %91 {offsets = [0, 128], sizes = [2, 128], strides = [1, 1]} : vector<2x384xf32> to vector<2x128xf32>
    %109 = arith.addf %107, %108 : vector<2x128xf32>
    %110 = arith.negf %109 : vector<2x128xf32>
    %111 = math.exp %110 : vector<2x128xf32>
    %cst_22 = arith.constant 1.000000e+00 : f32
    %112 = vector.broadcast %cst_22 : f32 to vector<2x128xf32>
    %113 = arith.addf %112, %111 : vector<2x128xf32>
    %114 = arith.divf %112, %113 : vector<2x128xf32>
    %115 = vector.extract_strided_slice %98 {offsets = [0, 256], sizes = [2, 128], strides = [1, 1]} : vector<2x384xf32> to vector<2x128xf32>
    %116 = vector.extract_strided_slice %91 {offsets = [0, 256], sizes = [2, 128], strides = [1, 1]} : vector<2x384xf32> to vector<2x128xf32>
    %117 = arith.addf %116, %12 : vector<2x128xf32>
    %118 = arith.mulf %106, %117 : vector<2x128xf32>
    %119 = arith.addf %115, %118 : vector<2x128xf32>
    %120 = math.tanh %119 : vector<2x128xf32>
    %cst_23 = arith.constant 1.000000e+00 : f32
    %121 = vector.broadcast %cst_23 : f32 to vector<2x128xf32>
    %122 = arith.subf %121, %114 : vector<2x128xf32>
    %123 = arith.mulf %122, %120 : vector<2x128xf32>
    %124 = arith.mulf %114, %90 : vector<2x128xf32>
    %125 = arith.addf %123, %124 : vector<2x128xf32>
    %cst_24 = arith.constant dense<0.000000e+00> : vector<2x384xf32>
    %126 = tpu.matmul %125, %9, %cst_24 {dimension_numbers = #tpu.dot_dimension_numbers<[1], [0], [0], [1], [0, 0, 1, 1], [], []>} : vector<2x128xf32>, vector<128x384xf32>, vector<2x384xf32> -> vector<2x384xf32>
    %127 = vector.extract_strided_slice %8 {offsets = [0, 3, 0], sizes = [2, 1, 384], strides = [1, 1, 1]} : vector<2x8x384xf32> to vector<2x1x384xf32>
    %128 = vector.shape_cast %127 : vector<2x1x384xf32> to vector<2x384xf32>
    %129 = vector.extract_strided_slice %8 {offsets = [0, 4, 0], sizes = [2, 1, 384], strides = [1, 1, 1]} : vector<2x8x384xf32> to vector<2x1x384xf32>
    %130 = vector.shape_cast %129 : vector<2x1x384xf32> to vector<2x384xf32>
    %131 = vector.shape_cast %16 : vector<1x384xi1> to vector<1x384xi1>
    %132 = vector.broadcast %131 : vector<1x384xi1> to vector<2x384xi1>
    %133 = arith.select %132, %128, %130 : vector<2x384xi1>, vector<2x384xf32>
    %134 = vector.extract_strided_slice %133 {offsets = [0, 0], sizes = [2, 128], strides = [1, 1]} : vector<2x384xf32> to vector<2x128xf32>
    %135 = vector.extract_strided_slice %126 {offsets = [0, 0], sizes = [2, 128], strides = [1, 1]} : vector<2x384xf32> to vector<2x128xf32>
    %136 = arith.addf %134, %135 : vector<2x128xf32>
    %137 = arith.negf %136 : vector<2x128xf32>
    %138 = math.exp %137 : vector<2x128xf32>
    %cst_25 = arith.constant 1.000000e+00 : f32
    %139 = vector.broadcast %cst_25 : f32 to vector<2x128xf32>
    %140 = arith.addf %139, %138 : vector<2x128xf32>
    %141 = arith.divf %139, %140 : vector<2x128xf32>
    %142 = vector.extract_strided_slice %133 {offsets = [0, 128], sizes = [2, 128], strides = [1, 1]} : vector<2x384xf32> to vector<2x128xf32>
    %143 = vector.extract_strided_slice %126 {offsets = [0, 128], sizes = [2, 128], strides = [1, 1]} : vector<2x384xf32> to vector<2x128xf32>
    %144 = arith.addf %142, %143 : vector<2x128xf32>
    %145 = arith.negf %144 : vector<2x128xf32>
    %146 = math.exp %145 : vector<2x128xf32>
    %cst_26 = arith.constant 1.000000e+00 : f32
    %147 = vector.broadcast %cst_26 : f32 to vector<2x128xf32>
    %148 = arith.addf %147, %146 : vector<2x128xf32>
    %149 = arith.divf %147, %148 : vector<2x128xf32>
    %150 = vector.extract_strided_slice %133 {offsets = [0, 256], sizes = [2, 128], strides = [1, 1]} : vector<2x384xf32> to vector<2x128xf32>
    %151 = vector.extract_strided_slice %126 {offsets = [0, 256], sizes = [2, 128], strides = [1, 1]} : vector<2x384xf32> to vector<2x128xf32>
    %152 = arith.addf %151, %12 : vector<2x128xf32>
    %153 = arith.mulf %141, %152 : vector<2x128xf32>
    %154 = arith.addf %150, %153 : vector<2x128xf32>
    %155 = math.tanh %154 : vector<2x128xf32>
    %cst_27 = arith.constant 1.000000e+00 : f32
    %156 = vector.broadcast %cst_27 : f32 to vector<2x128xf32>
    %157 = arith.subf %156, %149 : vector<2x128xf32>
    %158 = arith.mulf %157, %155 : vector<2x128xf32>
    %159 = arith.mulf %149, %125 : vector<2x128xf32>
    %160 = arith.addf %158, %159 : vector<2x128xf32>
    %cst_28 = arith.constant dense<0.000000e+00> : vector<2x384xf32>
    %161 = tpu.matmul %160, %9, %cst_28 {dimension_numbers = #tpu.dot_dimension_numbers<[1], [0], [0], [1], [0, 0, 1, 1], [], []>} : vector<2x128xf32>, vector<128x384xf32>, vector<2x384xf32> -> vector<2x384xf32>
    %162 = vector.extract_strided_slice %8 {offsets = [0, 4, 0], sizes = [2, 1, 384], strides = [1, 1, 1]} : vector<2x8x384xf32> to vector<2x1x384xf32>
    %163 = vector.shape_cast %162 : vector<2x1x384xf32> to vector<2x384xf32>
    %164 = vector.extract_strided_slice %8 {offsets = [0, 3, 0], sizes = [2, 1, 384], strides = [1, 1, 1]} : vector<2x8x384xf32> to vector<2x1x384xf32>
    %165 = vector.shape_cast %164 : vector<2x1x384xf32> to vector<2x384xf32>
    %166 = vector.shape_cast %16 : vector<1x384xi1> to vector<1x384xi1>
    %167 = vector.broadcast %166 : vector<1x384xi1> to vector<2x384xi1>
    %168 = arith.select %167, %163, %165 : vector<2x384xi1>, vector<2x384xf32>
    %169 = vector.extract_strided_slice %168 {offsets = [0, 0], sizes = [2, 128], strides = [1, 1]} : vector<2x384xf32> to vector<2x128xf32>
    %170 = vector.extract_strided_slice %161 {offsets = [0, 0], sizes = [2, 128], strides = [1, 1]} : vector<2x384xf32> to vector<2x128xf32>
    %171 = arith.addf %169, %170 : vector<2x128xf32>
    %172 = arith.negf %171 : vector<2x128xf32>
    %173 = math.exp %172 : vector<2x128xf32>
    %cst_29 = arith.constant 1.000000e+00 : f32
    %174 = vector.broadcast %cst_29 : f32 to vector<2x128xf32>
    %175 = arith.addf %174, %173 : vector<2x128xf32>
    %176 = arith.divf %174, %175 : vector<2x128xf32>
    %177 = vector.extract_strided_slice %168 {offsets = [0, 128], sizes = [2, 128], strides = [1, 1]} : vector<2x384xf32> to vector<2x128xf32>
    %178 = vector.extract_strided_slice %161 {offsets = [0, 128], sizes = [2, 128], strides = [1, 1]} : vector<2x384xf32> to vector<2x128xf32>
    %179 = arith.addf %177, %178 : vector<2x128xf32>
    %180 = arith.negf %179 : vector<2x128xf32>
    %181 = math.exp %180 : vector<2x128xf32>
    %cst_30 = arith.constant 1.000000e+00 : f32
    %182 = vector.broadcast %cst_30 : f32 to vector<2x128xf32>
    %183 = arith.addf %182, %181 : vector<2x128xf32>
    %184 = arith.divf %182, %183 : vector<2x128xf32>
    %185 = vector.extract_strided_slice %168 {offsets = [0, 256], sizes = [2, 128], strides = [1, 1]} : vector<2x384xf32> to vector<2x128xf32>
    %186 = vector.extract_strided_slice %161 {offsets = [0, 256], sizes = [2, 128], strides = [1, 1]} : vector<2x384xf32> to vector<2x128xf32>
    %187 = arith.addf %186, %12 : vector<2x128xf32>
    %188 = arith.mulf %176, %187 : vector<2x128xf32>
    %189 = arith.addf %185, %188 : vector<2x128xf32>
    %190 = math.tanh %189 : vector<2x128xf32>
    %cst_31 = arith.constant 1.000000e+00 : f32
    %191 = vector.broadcast %cst_31 : f32 to vector<2x128xf32>
    %192 = arith.subf %191, %184 : vector<2x128xf32>
    %193 = arith.mulf %192, %190 : vector<2x128xf32>
    %194 = arith.mulf %184, %160 : vector<2x128xf32>
    %195 = arith.addf %193, %194 : vector<2x128xf32>
    %cst_32 = arith.constant dense<0.000000e+00> : vector<2x384xf32>
    %196 = tpu.matmul %195, %9, %cst_32 {dimension_numbers = #tpu.dot_dimension_numbers<[1], [0], [0], [1], [0, 0, 1, 1], [], []>} : vector<2x128xf32>, vector<128x384xf32>, vector<2x384xf32> -> vector<2x384xf32>
    %197 = vector.extract_strided_slice %8 {offsets = [0, 5, 0], sizes = [2, 1, 384], strides = [1, 1, 1]} : vector<2x8x384xf32> to vector<2x1x384xf32>
    %198 = vector.shape_cast %197 : vector<2x1x384xf32> to vector<2x384xf32>
    %199 = vector.extract_strided_slice %8 {offsets = [0, 2, 0], sizes = [2, 1, 384], strides = [1, 1, 1]} : vector<2x8x384xf32> to vector<2x1x384xf32>
    %200 = vector.shape_cast %199 : vector<2x1x384xf32> to vector<2x384xf32>
    %201 = vector.shape_cast %16 : vector<1x384xi1> to vector<1x384xi1>
    %202 = vector.broadcast %201 : vector<1x384xi1> to vector<2x384xi1>
    %203 = arith.select %202, %198, %200 : vector<2x384xi1>, vector<2x384xf32>
    %204 = vector.extract_strided_slice %203 {offsets = [0, 0], sizes = [2, 128], strides = [1, 1]} : vector<2x384xf32> to vector<2x128xf32>
    %205 = vector.extract_strided_slice %196 {offsets = [0, 0], sizes = [2, 128], strides = [1, 1]} : vector<2x384xf32> to vector<2x128xf32>
    %206 = arith.addf %204, %205 : vector<2x128xf32>
    %207 = arith.negf %206 : vector<2x128xf32>
    %208 = math.exp %207 : vector<2x128xf32>
    %cst_33 = arith.constant 1.000000e+00 : f32
    %209 = vector.broadcast %cst_33 : f32 to vector<2x128xf32>
    %210 = arith.addf %209, %208 : vector<2x128xf32>
    %211 = arith.divf %209, %210 : vector<2x128xf32>
    %212 = vector.extract_strided_slice %203 {offsets = [0, 128], sizes = [2, 128], strides = [1, 1]} : vector<2x384xf32> to vector<2x128xf32>
    %213 = vector.extract_strided_slice %196 {offsets = [0, 128], sizes = [2, 128], strides = [1, 1]} : vector<2x384xf32> to vector<2x128xf32>
    %214 = arith.addf %212, %213 : vector<2x128xf32>
    %215 = arith.negf %214 : vector<2x128xf32>
    %216 = math.exp %215 : vector<2x128xf32>
    %cst_34 = arith.constant 1.000000e+00 : f32
    %217 = vector.broadcast %cst_34 : f32 to vector<2x128xf32>
    %218 = arith.addf %217, %216 : vector<2x128xf32>
    %219 = arith.divf %217, %218 : vector<2x128xf32>
    %220 = vector.extract_strided_slice %203 {offsets = [0, 256], sizes = [2, 128], strides = [1, 1]} : vector<2x384xf32> to vector<2x128xf32>
    %221 = vector.extract_strided_slice %196 {offsets = [0, 256], sizes = [2, 128], strides = [1, 1]} : vector<2x384xf32> to vector<2x128xf32>
    %222 = arith.addf %221, %12 : vector<2x128xf32>
    %223 = arith.mulf %211, %222 : vector<2x128xf32>
    %224 = arith.addf %220, %223 : vector<2x128xf32>
    %225 = math.tanh %224 : vector<2x128xf32>
    %cst_35 = arith.constant 1.000000e+00 : f32
    %226 = vector.broadcast %cst_35 : f32 to vector<2x128xf32>
    %227 = arith.subf %226, %219 : vector<2x128xf32>
    %228 = arith.mulf %227, %225 : vector<2x128xf32>
    %229 = arith.mulf %219, %195 : vector<2x128xf32>
    %230 = arith.addf %228, %229 : vector<2x128xf32>
    %cst_36 = arith.constant dense<0.000000e+00> : vector<2x384xf32>
    %231 = tpu.matmul %230, %9, %cst_36 {dimension_numbers = #tpu.dot_dimension_numbers<[1], [0], [0], [1], [0, 0, 1, 1], [], []>} : vector<2x128xf32>, vector<128x384xf32>, vector<2x384xf32> -> vector<2x384xf32>
    %232 = vector.extract_strided_slice %8 {offsets = [0, 6, 0], sizes = [2, 1, 384], strides = [1, 1, 1]} : vector<2x8x384xf32> to vector<2x1x384xf32>
    %233 = vector.shape_cast %232 : vector<2x1x384xf32> to vector<2x384xf32>
    %234 = vector.extract_strided_slice %8 {offsets = [0, 1, 0], sizes = [2, 1, 384], strides = [1, 1, 1]} : vector<2x8x384xf32> to vector<2x1x384xf32>
    %235 = vector.shape_cast %234 : vector<2x1x384xf32> to vector<2x384xf32>
    %236 = vector.shape_cast %16 : vector<1x384xi1> to vector<1x384xi1>
    %237 = vector.broadcast %236 : vector<1x384xi1> to vector<2x384xi1>
    %238 = arith.select %237, %233, %235 : vector<2x384xi1>, vector<2x384xf32>
    %239 = vector.extract_strided_slice %238 {offsets = [0, 0], sizes = [2, 128], strides = [1, 1]} : vector<2x384xf32> to vector<2x128xf32>
    %240 = vector.extract_strided_slice %231 {offsets = [0, 0], sizes = [2, 128], strides = [1, 1]} : vector<2x384xf32> to vector<2x128xf32>
    %241 = arith.addf %239, %240 : vector<2x128xf32>
    %242 = arith.negf %241 : vector<2x128xf32>
    %243 = math.exp %242 : vector<2x128xf32>
    %cst_37 = arith.constant 1.000000e+00 : f32
    %244 = vector.broadcast %cst_37 : f32 to vector<2x128xf32>
    %245 = arith.addf %244, %243 : vector<2x128xf32>
    %246 = arith.divf %244, %245 : vector<2x128xf32>
    %247 = vector.extract_strided_slice %238 {offsets = [0, 128], sizes = [2, 128], strides = [1, 1]} : vector<2x384xf32> to vector<2x128xf32>
    %248 = vector.extract_strided_slice %231 {offsets = [0, 128], sizes = [2, 128], strides = [1, 1]} : vector<2x384xf32> to vector<2x128xf32>
    %249 = arith.addf %247, %248 : vector<2x128xf32>
    %250 = arith.negf %249 : vector<2x128xf32>
    %251 = math.exp %250 : vector<2x128xf32>
    %cst_38 = arith.constant 1.000000e+00 : f32
    %252 = vector.broadcast %cst_38 : f32 to vector<2x128xf32>
    %253 = arith.addf %252, %251 : vector<2x128xf32>
    %254 = arith.divf %252, %253 : vector<2x128xf32>
    %255 = vector.extract_strided_slice %238 {offsets = [0, 256], sizes = [2, 128], strides = [1, 1]} : vector<2x384xf32> to vector<2x128xf32>
    %256 = vector.extract_strided_slice %231 {offsets = [0, 256], sizes = [2, 128], strides = [1, 1]} : vector<2x384xf32> to vector<2x128xf32>
    %257 = arith.addf %256, %12 : vector<2x128xf32>
    %258 = arith.mulf %246, %257 : vector<2x128xf32>
    %259 = arith.addf %255, %258 : vector<2x128xf32>
    %260 = math.tanh %259 : vector<2x128xf32>
    %cst_39 = arith.constant 1.000000e+00 : f32
    %261 = vector.broadcast %cst_39 : f32 to vector<2x128xf32>
    %262 = arith.subf %261, %254 : vector<2x128xf32>
    %263 = arith.mulf %262, %260 : vector<2x128xf32>
    %264 = arith.mulf %254, %230 : vector<2x128xf32>
    %265 = arith.addf %263, %264 : vector<2x128xf32>
    %cst_40 = arith.constant dense<0.000000e+00> : vector<2x384xf32>
    %266 = tpu.matmul %265, %9, %cst_40 {dimension_numbers = #tpu.dot_dimension_numbers<[1], [0], [0], [1], [0, 0, 1, 1], [], []>} : vector<2x128xf32>, vector<128x384xf32>, vector<2x384xf32> -> vector<2x384xf32>
    %267 = vector.extract_strided_slice %8 {offsets = [0, 7, 0], sizes = [2, 1, 384], strides = [1, 1, 1]} : vector<2x8x384xf32> to vector<2x1x384xf32>
    %268 = vector.shape_cast %267 : vector<2x1x384xf32> to vector<2x384xf32>
    %269 = vector.extract_strided_slice %8 {offsets = [0, 0, 0], sizes = [2, 1, 384], strides = [1, 1, 1]} : vector<2x8x384xf32> to vector<2x1x384xf32>
    %270 = vector.shape_cast %269 : vector<2x1x384xf32> to vector<2x384xf32>
    %271 = vector.shape_cast %16 : vector<1x384xi1> to vector<1x384xi1>
    %272 = vector.broadcast %271 : vector<1x384xi1> to vector<2x384xi1>
    %273 = arith.select %272, %268, %270 : vector<2x384xi1>, vector<2x384xf32>
    %274 = vector.extract_strided_slice %273 {offsets = [0, 0], sizes = [2, 128], strides = [1, 1]} : vector<2x384xf32> to vector<2x128xf32>
    %275 = vector.extract_strided_slice %266 {offsets = [0, 0], sizes = [2, 128], strides = [1, 1]} : vector<2x384xf32> to vector<2x128xf32>
    %276 = arith.addf %274, %275 : vector<2x128xf32>
    %277 = arith.negf %276 : vector<2x128xf32>
    %278 = math.exp %277 : vector<2x128xf32>
    %cst_41 = arith.constant 1.000000e+00 : f32
    %279 = vector.broadcast %cst_41 : f32 to vector<2x128xf32>
    %280 = arith.addf %279, %278 : vector<2x128xf32>
    %281 = arith.divf %279, %280 : vector<2x128xf32>
    %282 = vector.extract_strided_slice %273 {offsets = [0, 128], sizes = [2, 128], strides = [1, 1]} : vector<2x384xf32> to vector<2x128xf32>
    %283 = vector.extract_strided_slice %266 {offsets = [0, 128], sizes = [2, 128], strides = [1, 1]} : vector<2x384xf32> to vector<2x128xf32>
    %284 = arith.addf %282, %283 : vector<2x128xf32>
    %285 = arith.negf %284 : vector<2x128xf32>
    %286 = math.exp %285 : vector<2x128xf32>
    %cst_42 = arith.constant 1.000000e+00 : f32
    %287 = vector.broadcast %cst_42 : f32 to vector<2x128xf32>
    %288 = arith.addf %287, %286 : vector<2x128xf32>
    %289 = arith.divf %287, %288 : vector<2x128xf32>
    %290 = vector.extract_strided_slice %273 {offsets = [0, 256], sizes = [2, 128], strides = [1, 1]} : vector<2x384xf32> to vector<2x128xf32>
    %291 = vector.extract_strided_slice %266 {offsets = [0, 256], sizes = [2, 128], strides = [1, 1]} : vector<2x384xf32> to vector<2x128xf32>
    %292 = arith.addf %291, %12 : vector<2x128xf32>
    %293 = arith.mulf %281, %292 : vector<2x128xf32>
    %294 = arith.addf %290, %293 : vector<2x128xf32>
    %295 = math.tanh %294 : vector<2x128xf32>
    %cst_43 = arith.constant 1.000000e+00 : f32
    %296 = vector.broadcast %cst_43 : f32 to vector<2x128xf32>
    %297 = arith.subf %296, %289 : vector<2x128xf32>
    %298 = arith.mulf %297, %295 : vector<2x128xf32>
    %299 = arith.mulf %289, %265 : vector<2x128xf32>
    %300 = arith.addf %298, %299 : vector<2x128xf32>
    %301 = vector.shape_cast %55 : vector<2x128xf32> to vector<2x1x128xf32>
    %302 = vector.shape_cast %90 : vector<2x128xf32> to vector<2x1x128xf32>
    %303 = vector.shape_cast %125 : vector<2x128xf32> to vector<2x1x128xf32>
    %304 = vector.shape_cast %160 : vector<2x128xf32> to vector<2x1x128xf32>
    %305 = vector.shape_cast %195 : vector<2x128xf32> to vector<2x1x128xf32>
    %306 = vector.shape_cast %230 : vector<2x128xf32> to vector<2x1x128xf32>
    %307 = vector.shape_cast %265 : vector<2x128xf32> to vector<2x1x128xf32>
    %308 = vector.shape_cast %300 : vector<2x128xf32> to vector<2x1x128xf32>
    %309 = tpu.concatenate %301, %302, %303, %304, %305, %306, %307, %308 in 1 : vector<2x1x128xf32>, vector<2x1x128xf32>, vector<2x1x128xf32>, vector<2x1x128xf32>, vector<2x1x128xf32>, vector<2x1x128xf32>, vector<2x1x128xf32>, vector<2x1x128xf32> -> vector<2x8x128xf32>
    %310 = vector.shape_cast %300 : vector<2x128xf32> to vector<2x1x128xf32>
    %311 = vector.shape_cast %265 : vector<2x128xf32> to vector<2x1x128xf32>
    %312 = vector.shape_cast %230 : vector<2x128xf32> to vector<2x1x128xf32>
    %313 = vector.shape_cast %195 : vector<2x128xf32> to vector<2x1x128xf32>
    %314 = vector.shape_cast %160 : vector<2x128xf32> to vector<2x1x128xf32>
    %315 = vector.shape_cast %125 : vector<2x128xf32> to vector<2x1x128xf32>
    %316 = vector.shape_cast %90 : vector<2x128xf32> to vector<2x1x128xf32>
    %317 = vector.shape_cast %55 : vector<2x128xf32> to vector<2x1x128xf32>
    %318 = tpu.concatenate %310, %311, %312, %313, %314, %315, %316, %317 in 1 : vector<2x1x128xf32>, vector<2x1x128xf32>, vector<2x1x128xf32>, vector<2x1x128xf32>, vector<2x1x128xf32>, vector<2x1x128xf32>, vector<2x1x128xf32>, vector<2x1x128xf32> -> vector<2x8x128xf32>
    %319 = vector.shape_cast %19 : vector<1x1x128xi1> to vector<1x1x128xi1>
    %320 = vector.broadcast %319 : vector<1x1x128xi1> to vector<2x8x128xi1>
    %321 = arith.select %320, %309, %318 : vector<2x8x128xi1>, vector<2x8x128xf32>
    %c0_44 = arith.constant 0 : index
    %c0_45 = arith.constant 0 : index
    %c0_46 = arith.constant 0 : index
    %322 = vector.load %arg6[%c0_44, %c0_45, %c0_46] : memref<2x8x128xf32, #tpu.memory_space<vmem>>, vector<2x8x128xf32>
    tpu.vector_store %arg6[%c0_44, %c0_45, %c0_46], %321 {strides = array<i32>} : memref<2x8x128xf32, #tpu.memory_space<vmem>>, vector<2x8x128xf32>,
    return
  }
  func.func @transform_0(%arg0: i32) -> (i32, i32, i32) {
    %c0_i32 = arith.constant 0 : i32
    %c0_i32_0 = arith.constant 0 : i32
    %c0_i32_1 = arith.constant 0 : i32
    return %arg0, %c0_i32, %c0_i32_0 : i32, i32, i32
  }
  func.func @transform_1(%arg0: i32) -> (i32, i32) {
    %c0_i32 = arith.constant 0 : i32
    %c0_i32_0 = arith.constant 0 : i32
    %c0_i32_1 = arith.constant 0 : i32
    return %c0_i32, %c0_i32_0 : i32, i32
  }
  func.func @transform_2(%arg0: i32) -> (i32, i32) {
    %c0_i32 = arith.constant 0 : i32
    %c0_i32_0 = arith.constant 0 : i32
    %c0_i32_1 = arith.constant 0 : i32
    return %c0_i32, %c0_i32_0 : i32, i32
  }
  func.func @transform_3(%arg0: i32) -> (i32, i32) {
    %c0_i32 = arith.constant 0 : i32
    %c0_i32_0 = arith.constant 0 : i32
    %c0_i32_1 = arith.constant 0 : i32
    return %c0_i32, %c0_i32_0 : i32, i32
  }
  func.func @transform_4(%arg0: i32) -> (i32, i32) {
    %c0_i32 = arith.constant 0 : i32
    %c0_i32_0 = arith.constant 0 : i32
    %c0_i32_1 = arith.constant 0 : i32
    return %c0_i32, %c0_i32_0 : i32, i32
  }
  func.func @transform_5(%arg0: i32) -> (i32, i32, i32) {
    %c0_i32 = arith.constant 0 : i32
    %c0_i32_0 = arith.constant 0 : i32
    %c0_i32_1 = arith.constant 0 : i32
    return %arg0, %c0_i32, %c0_i32_0 : i32, i32, i32
  }
}

</mosaic_0001>

<llo_original>
// kernel: forward.3
$region0: #{forward.3}
  #allocation0 [shape = 'u32[]', space=smem, size = 0x4, offset = 0x4, fixed_abs, tag = 'smem constant byte address 0x4 - core index']
  #allocation1 [shape = 'u32[72,128]{1,0:T(1,128)}', space=vmem, size = 0x9000, scoped, tag = 'internal scratch']
  #allocation2 [shape = 'f32[1,1]{1,0:T(1,128)S(1)}', space=vmem, size = 0x200, scoped, tag = 'scoped memory for forward.3']
  %s0 = inlined_call_operand.vmem [shape: f32[2,8,64], index: 0, kind: input, shape index: {}]
  %s1 = inlined_call_operand.vmem [shape: f32[2,8,128], index: 1, kind: input, shape index: {}]
  %s2 = inlined_call_operand.vmem [shape: f32[2,8,4,64], index: 2, kind: input, shape index: {}]
  %s3 = inlined_call_operand.vmem [shape: bf16[128,64], index: 3, kind: input, shape index: {}]
  %s4 = inlined_call_operand.vmem [shape: f32[1,64], index: 4, kind: input, shape index: {}]
  %s5 = inlined_call_operand.vmem [shape: f32[1,64], index: 5, kind: input, shape index: {}]
  %s6 = inlined_call_operand.vmem [shape: f32[1,64], index: 6, kind: input, shape index: {}]
  %s7 = inlined_call_operand.<no memory space> [shape: f32[1,1], index: 7, kind: input, shape index: {}]
  %s8 = inlined_call_operand.vmem [shape: f32[64,3], index: 8, kind: input, shape index: {}]
  %s9 = inlined_call_operand.vmem [shape: f32[64,3], index: 9, kind: input, shape index: {}]
  %s10 = inlined_call_operand.vmem [shape: f32[1,3], index: 10, kind: input, shape index: {}]
  %s11 = inlined_call_operand.hbm [shape: f32[2,1,3], index: 11, kind: output, shape index: {}]
  %s12 = sld [smem:[#allocation0]]
  $region54: #{forward.3} parent=0
    _
  %s14 = ssub.s32 1, %s12
  %s15 = scalar_select 0, %s14, %s12
  %v16 = vstv %s7
  %17 = vst [vmem:[#allocation2] sm:$0x1] %v16
  $region1: #{forward.3} parent=0
    #allocation3 [shape = 'u8[1024]{0}', space=vmem, size = 0x400, scoped, tag = 'output window, operand 0, single buffered']
    #allocation4 [shape = 's32[1]{0}', space=sflag, size = 0x4, scoped, tag = 'scoped memory for forward.3']
    %18 = vsyncpa [#allocation4], 0
    // Predicated region
    $region2: #{forward.3} parent=1 // pred_check
      _
    $region3: #{forward.3} parent=1 // pred_check_branch
      %20 = sbr.rel (0) target = $region5
    $region4: #{forward.3} parent=1 // pred_region
      _
    $region5: #{forward.3} parent=1 // pred_fallthru
      _
    // Predicated region
    $region6: #{forward.3} parent=1 // pred_check
      _
    $region7: #{forward.3} parent=1 // pred_check_branch
      %22 = sbr.rel (0) target = $region9
    $region8: #{forward.3} parent=1 // pred_region
      _
    $region9: #{forward.3} parent=1 // pred_fallthru
      _
    // Predicated region
    $region10: #{forward.3} parent=1 // pred_check
      _
    $region11: #{forward.3} parent=1 // pred_check_branch
      %24 = sbr.rel (0) target = $region13
    $region12: #{forward.3} parent=1 // pred_region
      _
    $region13: #{forward.3} parent=1 // pred_fallthru
      _
    // Predicated region
    $region14: #{forward.3} parent=1 // pred_check
      _
    $region15: #{forward.3} parent=1 // pred_check_branch
      %26 = sbr.rel (0) target = $region17
    $region16: #{forward.3} parent=1 // pred_region
      _
    $region17: #{forward.3} parent=1 // pred_fallthru
      _
    // Predicated region
    $region18: #{forward.3} parent=1 // pred_check
      _
    $region19: #{forward.3} parent=1 // pred_check_branch
      %28 = sbr.rel (0) target = $region21
    $region20: #{forward.3} parent=1 // pred_region
      _
    $region21: #{forward.3} parent=1 // pred_fallthru
      _
    // Predicated region
    $region22: #{forward.3} parent=1 // pred_check
      _
    $region23: #{forward.3} parent=1 // pred_check_branch
      %30 = sbr.rel (0) target = $region25
    $region24: #{forward.3} parent=1 // pred_region
      _
    $region25: #{forward.3} parent=1 // pred_fallthru
      _
    // Predicated region
    $region26: #{forward.3} parent=1 // pred_check
      _
    $region27: #{forward.3} parent=1 // pred_check_branch
      %32 = sbr.rel (0) target = $region29
    $region28: #{forward.3} parent=1 // pred_region
      _
    $region29: #{forward.3} parent=1 // pred_fallthru
      _
    // Predicated region
    $region30: #{forward.3} parent=1 // pred_check
      _
    $region31: #{forward.3} parent=1 // pred_check_branch
      %34 = sbr.rel (0) target = $region33
    $region32: #{forward.3} parent=1 // pred_region
      _
    $region33: #{forward.3} parent=1 // pred_fallthru
      _
    // Predicated region
    $region34: #{forward.3} parent=1 // pred_check
      _
    $region35: #{forward.3} parent=1 // pred_check_branch
      %36 = sbr.rel (0) target = $region37
    $region36: #{forward.3} parent=1 // pred_region
      _
    $region37: #{forward.3} parent=1 // pred_fallthru
      _
    // Predicated region
    $region38: #{forward.3} parent=1 // pred_check
      _
    $region39: #{forward.3} parent=1 // pred_check_branch
      %38 = sbr.rel (0) target = $region41
    $region40: #{forward.3} parent=1 // pred_region
      _
    $region41: #{forward.3} parent=1 // pred_fallthru
      _
    // Predicated region
    $region42: #{forward.3} parent=1 // pred_check
      _
    $region43: #{forward.3} parent=1 // pred_check_branch
      %40 = sbr.rel (0) target = $region45
    $region44: #{forward.3} parent=1 // pred_region
      _
    $region45: #{forward.3} parent=1 // pred_fallthru
      _
    %v41 = vld [vmem:[%s1] sm:$0xff]
    %v42 = vld [vmem:[%s1 + $0x8] sm:$0xff]
    %v43 = vpack.c.bf16 %v42, %v41
    %v44 = vld [vmem:[%s3] sm:$0xf]
    %v45 = vld [vmem:[%s3 + $0x4] sm:$0xf]
    %v46 = vld [vmem:[%s3 + $0x8] sm:$0xf]
    %v47 = vld [vmem:[%s3 + $0xc] sm:$0xf]
    %v48 = vld [vmem:[%s3 + $0x10] sm:$0xf]
    %v49 = vld [vmem:[%s3 + $0x14] sm:$0xf]
    %v50 = vld [vmem:[%s3 + $0x18] sm:$0xf]
    %v51 = vld [vmem:[%s3 + $0x1c] sm:$0xf]
    %v52 = vld [vmem:[%s3 + $0x20] sm:$0xf]
    %v53 = vld [vmem:[%s3 + $0x24] sm:$0xf]
    %v54 = vld [vmem:[%s3 + $0x28] sm:$0xf]
    %v55 = vld [vmem:[%s3 + $0x2c] sm:$0xf]
    %v56 = vld [vmem:[%s3 + $0x30] sm:$0xf]
    %v57 = vld [vmem:[%s3 + $0x34] sm:$0xf]
    %v58 = vld [vmem:[%s3 + $0x38] sm:$0xf]
    %v59 = vld [vmem:[%s3 + $0x3c] sm:$0xf]
    %v60 = vld [vmem:[%s4] sm:$0x1]
    %v62 = vperm.slane %v60, 0
    %v80 = vunpack.c.l.b16 %v44
    %v81 = vunpack.c.l.b16 %v45
    %v82 = vunpack.c.l.b16 %v46
    %v83 = vunpack.c.l.b16 %v47
    %v84 = vunpack.c.l.b16 %v48
    %v85 = vunpack.c.l.b16 %v49
    %v86 = vunpack.c.l.b16 %v50
    %v87 = vunpack.c.l.b16 %v51
    %v88 = vunpack.c.l.b16 %v52
    %v89 = vunpack.c.l.b16 %v53
    %v90 = vunpack.c.l.b16 %v54
    %v91 = vunpack.c.l.b16 %v55
    %v92 = vunpack.c.l.b16 %v56
    %v93 = vunpack.c.l.b16 %v57
    %v94 = vunpack.c.l.b16 %v58
    %v95 = vunpack.c.l.b16 %v59
    %v96 = vpack.c.b16 %v81, %v80
    %v97 = vpack.c.b16 %v83, %v82
    %v98 = vpack.c.b16 %v85, %v84
    %v99 = vpack.c.b16 %v87, %v86
    %v100 = vpack.c.b16 %v89, %v88
    %v101 = vpack.c.b16 %v91, %v90
    %v102 = vpack.c.b16 %v93, %v92
    %v103 = vpack.c.b16 %v95, %v94
    %112 = vmatpush.bf16.msra.mxu0 %v103
    %113 = vmatpush.bf16.msra.mxu0 %v102
    %114 = vmatpush.bf16.msra.mxu0 %v101
    %115 = vmatpush.bf16.msra.mxu0 %v100
    %116 = vmatpush.bf16.msra.mxu0 %v99
    %117 = vmatpush.bf16.msra.mxu0 %v98
    %118 = vmatpush.bf16.msra.mxu0 %v97
    %119 = vmatpush.bf16.msra.mxu0 %v96
    %120 = vmatmul.bf16.gmra.mxu0 %v43
    %v121 = vpop.f32.mrf.mxu0
    %v122 = vadd.f32 %v62, %v121
    %v123 = vpop.f32.mrf.mxu0
    %v124 = vadd.f32 %v62, %v123
    %125 = vdwg.mxu0
    %v126 = vld [vmem:[%s2] sm:$0xf]
    %v127 = vld [vmem:[%s2 + $0x4] sm:$0xf]
    %v128 = vld [vmem:[%s2 + $0x8] sm:$0xf]
    %v129 = vld [vmem:[%s2 + $0xc] sm:$0xf]
    %v130 = vld [vmem:[%s2 + $0x10] sm:$0xf]
    %v131 = vld [vmem:[%s2 + $0x14] sm:$0xf]
    %v132 = vld [vmem:[%s2 + $0x18] sm:$0xf]
    %v133 = vld [vmem:[%s2 + $0x1c] sm:$0xf]
    %v134 = vld [vmem:[%s2 + $0x20] sm:$0xf]
    %v135 = vld [vmem:[%s2 + $0x24] sm:$0xf]
    %v136 = vld [vmem:[%s2 + $0x28] sm:$0xf]
    %v137 = vld [vmem:[%s2 + $0x2c] sm:$0xf]
    %v138 = vld [vmem:[%s2 + $0x30] sm:$0xf]
    %v139 = vld [vmem:[%s2 + $0x34] sm:$0xf]
    %v140 = vld [vmem:[%s2 + $0x38] sm:$0xf]
    %v141 = vld [vmem:[%s2 + $0x3c] sm:$0xf]
    %v144 = vrot.slane %v122, 1
    %v145 = vrot.slane %v122, 2
    %v146 = vrot.slane %v122, 3
    %v147 = vrot.slane %v122, 4
    %v148 = vrot.slane %v122, 5
    %v149 = vrot.slane %v122, 6
    %v150 = vrot.slane %v122, 7
    %v151 = vrot.slane %v124, 1
    %v152 = vrot.slane %v124, 2
    %v153 = vrot.slane %v124, 3
    %v154 = vrot.slane %v124, 4
    %v155 = vrot.slane %v124, 5
    %v156 = vrot.slane %v124, 6
    %v157 = vrot.slane %v124, 7
    %v158 = vperm.slane %v122, 0
    %v159 = vperm.slane %v144, 0
    %v160 = vperm.slane %v145, 0
    %v161 = vperm.slane %v146, 0
    %v162 = vperm.slane %v147, 0
    %v163 = vperm.slane %v148, 0
    %v164 = vperm.slane %v149, 0
    %v165 = vperm.slane %v150, 0
    %v166 = vperm.slane %v124, 0
    %v167 = vperm.slane %v151, 0
    %v168 = vperm.slane %v152, 0
    %v169 = vperm.slane %v153, 0
    %v170 = vperm.slane %v154, 0
    %v171 = vperm.slane %v155, 0
    %v172 = vperm.slane %v156, 0
    %v173 = vperm.slane %v157, 0
    %v190 = vmul.f32 %v126, %v158
    %v191 = vmul.f32 %v127, %v159
    %v192 = vmul.f32 %v128, %v160
    %v193 = vmul.f32 %v129, %v161
    %v194 = vmul.f32 %v130, %v162
    %v195 = vmul.f32 %v131, %v163
    %v196 = vmul.f32 %v132, %v164
    %v197 = vmul.f32 %v133, %v165
    %v198 = vmul.f32 %v134, %v166
    %v199 = vmul.f32 %v135, %v167
    %v200 = vmul.f32 %v136, %v168
    %v201 = vmul.f32 %v137, %v169
    %v202 = vmul.f32 %v138, %v170
    %v203 = vmul.f32 %v139, %v171
    %v204 = vmul.f32 %v140, %v172
    %v205 = vmul.f32 %v141, %v173
    %vm206 = vcmask 519168
    %v207 = vsel %vm206, %v190, 0.0
    %208 = vadd.xlane.f32.xlu0 %v207
    %v209 = vpop.xlane.xlu0 %208
    %v210 = vsel %vm206, %v191, 0.0
    %211 = vadd.xlane.f32.xlu0 %v210
    %v212 = vpop.xlane.xlu0 %211
    %v213 = vsel %vm206, %v192, 0.0
    %214 = vadd.xlane.f32.xlu0 %v213
    %v215 = vpop.xlane.xlu0 %214
    %v216 = vsel %vm206, %v193, 0.0
    %217 = vadd.xlane.f32.xlu0 %v216
    %v218 = vpop.xlane.xlu0 %217
    %v219 = vsel %vm206, %v194, 0.0
    %220 = vadd.xlane.f32.xlu0 %v219
    %v221 = vpop.xlane.xlu0 %220
    %v222 = vsel %vm206, %v195, 0.0
    %223 = vadd.xlane.f32.xlu0 %v222
    %v224 = vpop.xlane.xlu0 %223
    %v225 = vsel %vm206, %v196, 0.0
    %226 = vadd.xlane.f32.xlu0 %v225
    %v227 = vpop.xlane.xlu0 %226
    %v228 = vsel %vm206, %v197, 0.0
    %229 = vadd.xlane.f32.xlu0 %v228
    %v230 = vpop.xlane.xlu0 %229
    %v231 = vsel %vm206, %v198, 0.0
    %232 = vadd.xlane.f32.xlu0 %v231
    %v233 = vpop.xlane.xlu0 %232
    %v234 = vsel %vm206, %v199, 0.0
    %235 = vadd.xlane.f32.xlu0 %v234
    %v236 = vpop.xlane.xlu0 %235
    %v237 = vsel %vm206, %v200, 0.0
    %238 = vadd.xlane.f32.xlu0 %v237
    %v239 = vpop.xlane.xlu0 %238
    %v240 = vsel %vm206, %v201, 0.0
    %241 = vadd.xlane.f32.xlu0 %v240
    %v242 = vpop.xlane.xlu0 %241
    %v243 = vsel %vm206, %v202, 0.0
    %244 = vadd.xlane.f32.xlu0 %v243
    %v245 = vpop.xlane.xlu0 %244
    %v246 = vsel %vm206, %v203, 0.0
    %247 = vadd.xlane.f32.xlu0 %v246
    %v248 = vpop.xlane.xlu0 %247
    %v249 = vsel %vm206, %v204, 0.0
    %250 = vadd.xlane.f32.xlu0 %v249
    %v251 = vpop.xlane.xlu0 %250
    %v252 = vsel %vm206, %v205, 0.0
    %253 = vadd.xlane.f32.xlu0 %v252
    %v254 = vpop.xlane.xlu0 %253
    %vm255 = vcmask 1043456
    %v256 = vsel %vm255, %v209, -inf
    %v257 = vrot.slane %v256, 4
    %v258 = vmax.f32 %v256, %v257
    %v259 = vrot.slane %v258, 2
    %v260 = vmax.f32 %v258, %v259
    %v261 = vrot.slane %v260, 1
    %v262 = vmax.f32 %v260, %v261
    %v263 = vsel %vm255, %v212, -inf
    %v264 = vrot.slane %v263, 4
    %v265 = vmax.f32 %v263, %v264
    %v266 = vrot.slane %v265, 2
    %v267 = vmax.f32 %v265, %v266
    %v268 = vrot.slane %v267, 1
    %v269 = vmax.f32 %v267, %v268
    %v270 = vsel %vm255, %v215, -inf
    %v271 = vrot.slane %v270, 4
    %v272 = vmax.f32 %v270, %v271
    %v273 = vrot.slane %v272, 2
    %v274 = vmax.f32 %v272, %v273
    %v275 = vrot.slane %v274, 1
    %v276 = vmax.f32 %v274, %v275
    %v277 = vsel %vm255, %v218, -inf
    %v278 = vrot.slane %v277, 4
    %v279 = vmax.f32 %v277, %v278
    %v280 = vrot.slane %v279, 2
    %v281 = vmax.f32 %v279, %v280
    %v282 = vrot.slane %v281, 1
    %v283 = vmax.f32 %v281, %v282
    %v284 = vsel %vm255, %v221, -inf
    %v285 = vrot.slane %v284, 4
    %v286 = vmax.f32 %v284, %v285
    %v287 = vrot.slane %v286, 2
    %v288 = vmax.f32 %v286, %v287
    %v289 = vrot.slane %v288, 1
    %v290 = vmax.f32 %v288, %v289
    %v291 = vsel %vm255, %v224, -inf
    %v292 = vrot.slane %v291, 4
    %v293 = vmax.f32 %v291, %v292
    %v294 = vrot.slane %v293, 2
    %v295 = vmax.f32 %v293, %v294
    %v296 = vrot.slane %v295, 1
    %v297 = vmax.f32 %v295, %v296
    %v298 = vsel %vm255, %v227, -inf
    %v299 = vrot.slane %v298, 4
    %v300 = vmax.f32 %v298, %v299
    %v301 = vrot.slane %v300, 2
    %v302 = vmax.f32 %v300, %v301
    %v303 = vrot.slane %v302, 1
    %v304 = vmax.f32 %v302, %v303
    %v305 = vsel %vm255, %v230, -inf
    %v306 = vrot.slane %v305, 4
    %v307 = vmax.f32 %v305, %v306
    %v308 = vrot.slane %v307, 2
    %v309 = vmax.f32 %v307, %v308
    %v310 = vrot.slane %v309, 1
    %v311 = vmax.f32 %v309, %v310
    %v312 = vsel %vm255, %v233, -inf
    %v313 = vrot.slane %v312, 4
    %v314 = vmax.f32 %v312, %v313
    %v315 = vrot.slane %v314, 2
    %v316 = vmax.f32 %v314, %v315
    %v317 = vrot.slane %v316, 1
    %v318 = vmax.f32 %v316, %v317
    %v319 = vsel %vm255, %v236, -inf
    %v320 = vrot.slane %v319, 4
    %v321 = vmax.f32 %v319, %v320
    %v322 = vrot.slane %v321, 2
    %v323 = vmax.f32 %v321, %v322
    %v324 = vrot.slane %v323, 1
    %v325 = vmax.f32 %v323, %v324
    %v326 = vsel %vm255, %v239, -inf
    %v327 = vrot.slane %v326, 4
    %v328 = vmax.f32 %v326, %v327
    %v329 = vrot.slane %v328, 2
    %v330 = vmax.f32 %v328, %v329
    %v331 = vrot.slane %v330, 1
    %v332 = vmax.f32 %v330, %v331
    %v333 = vsel %vm255, %v242, -inf
    %v334 = vrot.slane %v333, 4
    %v335 = vmax.f32 %v333, %v334
    %v336 = vrot.slane %v335, 2
    %v337 = vmax.f32 %v335, %v336
    %v338 = vrot.slane %v337, 1
    %v339 = vmax.f32 %v337, %v338
    %v340 = vsel %vm255, %v245, -inf
    %v341 = vrot.slane %v340, 4
    %v342 = vmax.f32 %v340, %v341
    %v343 = vrot.slane %v342, 2
    %v344 = vmax.f32 %v342, %v343
    %v345 = vrot.slane %v344, 1
    %v346 = vmax.f32 %v344, %v345
    %v347 = vsel %vm255, %v248, -inf
    %v348 = vrot.slane %v347, 4
    %v349 = vmax.f32 %v347, %v348
    %v350 = vrot.slane %v349, 2
    %v351 = vmax.f32 %v349, %v350
    %v352 = vrot.slane %v351, 1
    %v353 = vmax.f32 %v351, %v352
    %v354 = vsel %vm255, %v251, -inf
    %v355 = vrot.slane %v354, 4
    %v356 = vmax.f32 %v354, %v355
    %v357 = vrot.slane %v356, 2
    %v358 = vmax.f32 %v356, %v357
    %v359 = vrot.slane %v358, 1
    %v360 = vmax.f32 %v358, %v359
    %v361 = vsel %vm255, %v254, -inf
    %v362 = vrot.slane %v361, 4
    %v363 = vmax.f32 %v361, %v362
    %v364 = vrot.slane %v363, 2
    %v365 = vmax.f32 %v363, %v364
    %v366 = vrot.slane %v365, 1
    %v367 = vmax.f32 %v365, %v366
    %v368 = vsub.f32 %v209, %v262
    %v369 = vsub.f32 %v212, %v269
    %v370 = vsub.f32 %v215, %v276
    %v371 = vsub.f32 %v218, %v283
    %v372 = vsub.f32 %v221, %v290
    %v373 = vsub.f32 %v224, %v297
    %v374 = vsub.f32 %v227, %v304
    %v375 = vsub.f32 %v230, %v311
    %v376 = vsub.f32 %v233, %v318
    %v377 = vsub.f32 %v236, %v325
    %v378 = vsub.f32 %v239, %v332
    %v379 = vsub.f32 %v242, %v339
    %v380 = vsub.f32 %v245, %v346
    %v381 = vsub.f32 %v248, %v353
    %v382 = vsub.f32 %v251, %v360
    %v383 = vsub.f32 %v254, %v367
    %v384 = vmul.f32 %v368, 1.442695
    %v385 = vpow.pop %v384
    %v386 = vmul.f32 %v369, 1.442695
    %v387 = vpow.pop %v386
    %v388 = vmul.f32 %v370, 1.442695
    %v389 = vpow.pop %v388
    %v390 = vmul.f32 %v371, 1.442695
    %v391 = vpow.pop %v390
    %v392 = vmul.f32 %v372, 1.442695
    %v393 = vpow.pop %v392
    %v394 = vmul.f32 %v373, 1.442695
    %v395 = vpow.pop %v394
    %v396 = vmul.f32 %v374, 1.442695
    %v397 = vpow.pop %v396
    %v398 = vmul.f32 %v375, 1.442695
    %v399 = vpow.pop %v398
    %v400 = vmul.f32 %v376, 1.442695
    %v401 = vpow.pop %v400
    %v402 = vmul.f32 %v377, 1.442695
    %v403 = vpow.pop %v402
    %v404 = vmul.f32 %v378, 1.442695
    %v405 = vpow.pop %v404
    %v406 = vmul.f32 %v379, 1.442695
    %v407 = vpow.pop %v406
    %v408 = vmul.f32 %v380, 1.442695
    %v409 = vpow.pop %v408
    %v410 = vmul.f32 %v381, 1.442695
    %v411 = vpow.pop %v410
    %v412 = vmul.f32 %v382, 1.442695
    %v413 = vpow.pop %v412
    %v414 = vmul.f32 %v383, 1.442695
    %v415 = vpow.pop %v414
    %v416 = vsel %vm255, %v385, 0.0
    %v417 = vrot.slane %v416, 4
    %v418 = vadd.f32 %v416, %v417
    %v419 = vrot.slane %v418, 2
    %v420 = vadd.f32 %v418, %v419
    %v421 = vrot.slane %v420, 1
    %v422 = vadd.f32 %v420, %v421
    %v423 = vsel %vm255, %v387, 0.0
    %v424 = vrot.slane %v423, 4
    %v425 = vadd.f32 %v423, %v424
    %v426 = vrot.slane %v425, 2
    %v427 = vadd.f32 %v425, %v426
    %v428 = vrot.slane %v427, 1
    %v429 = vadd.f32 %v427, %v428
    %v430 = vsel %vm255, %v389, 0.0
    %v431 = vrot.slane %v430, 4
    %v432 = vadd.f32 %v430, %v431
    %v433 = vrot.slane %v432, 2
    %v434 = vadd.f32 %v432, %v433
    %v435 = vrot.slane %v434, 1
    %v436 = vadd.f32 %v434, %v435
    %v437 = vsel %vm255, %v391, 0.0
    %v438 = vrot.slane %v437, 4
    %v439 = vadd.f32 %v437, %v438
    %v440 = vrot.slane %v439, 2
    %v441 = vadd.f32 %v439, %v440
    %v442 = vrot.slane %v441, 1
    %v443 = vadd.f32 %v441, %v442
    %v444 = vsel %vm255, %v393, 0.0
    %v445 = vrot.slane %v444, 4
    %v446 = vadd.f32 %v444, %v445
    %v447 = vrot.slane %v446, 2
    %v448 = vadd.f32 %v446, %v447
    %v449 = vrot.slane %v448, 1
    %v450 = vadd.f32 %v448, %v449
    %v451 = vsel %vm255, %v395, 0.0
    %v452 = vrot.slane %v451, 4
    %v453 = vadd.f32 %v451, %v452
    %v454 = vrot.slane %v453, 2
    %v455 = vadd.f32 %v453, %v454
    %v456 = vrot.slane %v455, 1
    %v457 = vadd.f32 %v455, %v456
    %v458 = vsel %vm255, %v397, 0.0
    %v459 = vrot.slane %v458, 4
    %v460 = vadd.f32 %v458, %v459
    %v461 = vrot.slane %v460, 2
    %v462 = vadd.f32 %v460, %v461
    %v463 = vrot.slane %v462, 1
    %v464 = vadd.f32 %v462, %v463
    %v465 = vsel %vm255, %v399, 0.0
    %v466 = vrot.slane %v465, 4
    %v467 = vadd.f32 %v465, %v466
    %v468 = vrot.slane %v467, 2
    %v469 = vadd.f32 %v467, %v468
    %v470 = vrot.slane %v469, 1
    %v471 = vadd.f32 %v469, %v470
    %v472 = vsel %vm255, %v401, 0.0
    %v473 = vrot.slane %v472, 4
    %v474 = vadd.f32 %v472, %v473
    %v475 = vrot.slane %v474, 2
    %v476 = vadd.f32 %v474, %v475
    %v477 = vrot.slane %v476, 1
    %v478 = vadd.f32 %v476, %v477
    %v479 = vsel %vm255, %v403, 0.0
    %v480 = vrot.slane %v479, 4
    %v481 = vadd.f32 %v479, %v480
    %v482 = vrot.slane %v481, 2
    %v483 = vadd.f32 %v481, %v482
    %v484 = vrot.slane %v483, 1
    %v485 = vadd.f32 %v483, %v484
    %v486 = vsel %vm255, %v405, 0.0
    %v487 = vrot.slane %v486, 4
    %v488 = vadd.f32 %v486, %v487
    %v489 = vrot.slane %v488, 2
    %v490 = vadd.f32 %v488, %v489
    %v491 = vrot.slane %v490, 1
    %v492 = vadd.f32 %v490, %v491
    %v493 = vsel %vm255, %v407, 0.0
    %v494 = vrot.slane %v493, 4
    %v495 = vadd.f32 %v493, %v494
    %v496 = vrot.slane %v495, 2
    %v497 = vadd.f32 %v495, %v496
    %v498 = vrot.slane %v497, 1
    %v499 = vadd.f32 %v497, %v498
    %v500 = vsel %vm255, %v409, 0.0
    %v501 = vrot.slane %v500, 4
    %v502 = vadd.f32 %v500, %v501
    %v503 = vrot.slane %v502, 2
    %v504 = vadd.f32 %v502, %v503
    %v505 = vrot.slane %v504, 1
    %v506 = vadd.f32 %v504, %v505
    %v507 = vsel %vm255, %v411, 0.0
    %v508 = vrot.slane %v507, 4
    %v509 = vadd.f32 %v507, %v508
    %v510 = vrot.slane %v509, 2
    %v511 = vadd.f32 %v509, %v510
    %v512 = vrot.slane %v511, 1
    %v513 = vadd.f32 %v511, %v512
    %v514 = vsel %vm255, %v413, 0.0
    %v515 = vrot.slane %v514, 4
    %v516 = vadd.f32 %v514, %v515
    %v517 = vrot.slane %v516, 2
    %v518 = vadd.f32 %v516, %v517
    %v519 = vrot.slane %v518, 1
    %v520 = vadd.f32 %v518, %v519
    %v521 = vsel %vm255, %v415, 0.0
    %v522 = vrot.slane %v521, 4
    %v523 = vadd.f32 %v521, %v522
    %v524 = vrot.slane %v523, 2
    %v525 = vadd.f32 %v523, %v524
    %v526 = vrot.slane %v525, 1
    %v527 = vadd.f32 %v525, %v526
    %v528 = vrcp.pop %v422
    %v529 = vrcp.pop %v429
    %v530 = vrcp.pop %v436
    %v531 = vrcp.pop %v443
    %v532 = vrcp.pop %v450
    %v533 = vrcp.pop %v457
    %v534 = vrcp.pop %v464
    %v535 = vrcp.pop %v471
    %v536 = vrcp.pop %v478
    %v537 = vrcp.pop %v485
    %v538 = vrcp.pop %v492
    %v539 = vrcp.pop %v499
    %v540 = vrcp.pop %v506
    %v541 = vrcp.pop %v513
    %v542 = vrcp.pop %v520
    %v543 = vrcp.pop %v527
    %v544 = vmul.f32 %v385, %v528
    %v545 = vmul.f32 %v387, %v529
    %v546 = vmul.f32 %v389, %v530
    %v547 = vmul.f32 %v391, %v531
    %v548 = vmul.f32 %v393, %v532
    %v549 = vmul.f32 %v395, %v533
    %v550 = vmul.f32 %v397, %v534
    %v551 = vmul.f32 %v399, %v535
    %v552 = vmul.f32 %v401, %v536
    %v553 = vmul.f32 %v403, %v537
    %v554 = vmul.f32 %v405, %v538
    %v555 = vmul.f32 %v407, %v539
    %v556 = vmul.f32 %v409, %v540
    %v557 = vmul.f32 %v411, %v541
    %v558 = vmul.f32 %v413, %v542
    %v559 = vmul.f32 %v415, %v543
    %v560 = vmul.f32 %v544, %v126
    %v561 = vmul.f32 %v545, %v127
    %v562 = vmul.f32 %v546, %v128
    %v563 = vmul.f32 %v547, %v129
    %v564 = vmul.f32 %v548, %v130
    %v565 = vmul.f32 %v549, %v131
    %v566 = vmul.f32 %v550, %v132
    %v567 = vmul.f32 %v551, %v133
    %v568 = vmul.f32 %v552, %v134
    %v569 = vmul.f32 %v553, %v135
    %v570 = vmul.f32 %v554, %v136
    %v571 = vmul.f32 %v555, %v137
    %v572 = vmul.f32 %v556, %v138
    %v573 = vmul.f32 %v557, %v139
    %v574 = vmul.f32 %v558, %v140
    %v575 = vmul.f32 %v559, %v141
    %v576 = vsel %vm206, %v560, 0.0
    %v577 = vrot.slane %v576, 4
    %v578 = vadd.f32 %v576, %v577
    %v579 = vrot.slane %v578, 2
    %v580 = vadd.f32 %v578, %v579
    %v581 = vrot.slane %v580, 1
    %v582 = vadd.f32 %v580, %v581
    %v583 = vsel %vm206, %v561, 0.0
    %v584 = vrot.slane %v583, 4
    %v585 = vadd.f32 %v583, %v584
    %v586 = vrot.slane %v585, 2
    %v587 = vadd.f32 %v585, %v586
    %v588 = vrot.slane %v587, 1
    %v589 = vadd.f32 %v587, %v588
    %v590 = vsel %vm206, %v562, 0.0
    %v591 = vrot.slane %v590, 4
    %v592 = vadd.f32 %v590, %v591
    %v593 = vrot.slane %v592, 2
    %v594 = vadd.f32 %v592, %v593
    %v595 = vrot.slane %v594, 1
    %v596 = vadd.f32 %v594, %v595
    %v597 = vsel %vm206, %v563, 0.0
    %v598 = vrot.slane %v597, 4
    %v599 = vadd.f32 %v597, %v598
    %v600 = vrot.slane %v599, 2
    %v601 = vadd.f32 %v599, %v600
    %v602 = vrot.slane %v601, 1
    %v603 = vadd.f32 %v601, %v602
    %v604 = vsel %vm206, %v564, 0.0
    %v605 = vrot.slane %v604, 4
    %v606 = vadd.f32 %v604, %v605
    %v607 = vrot.slane %v606, 2
    %v608 = vadd.f32 %v606, %v607
    %v609 = vrot.slane %v608, 1
    %v610 = vadd.f32 %v608, %v609
    %v611 = vsel %vm206, %v565, 0.0
    %v612 = vrot.slane %v611, 4
    %v613 = vadd.f32 %v611, %v612
    %v614 = vrot.slane %v613, 2
    %v615 = vadd.f32 %v613, %v614
    %v616 = vrot.slane %v615, 1
    %v617 = vadd.f32 %v615, %v616
    %v618 = vsel %vm206, %v566, 0.0
    %v619 = vrot.slane %v618, 4
    %v620 = vadd.f32 %v618, %v619
    %v621 = vrot.slane %v620, 2
    %v622 = vadd.f32 %v620, %v621
    %v623 = vrot.slane %v622, 1
    %v624 = vadd.f32 %v622, %v623
    %v625 = vsel %vm206, %v567, 0.0
    %v626 = vrot.slane %v625, 4
    %v627 = vadd.f32 %v625, %v626
    %v628 = vrot.slane %v627, 2
    %v629 = vadd.f32 %v627, %v628
    %v630 = vrot.slane %v629, 1
    %v631 = vadd.f32 %v629, %v630
    %v632 = vsel %vm206, %v568, 0.0
    %v633 = vrot.slane %v632, 4
    %v634 = vadd.f32 %v632, %v633
    %v635 = vrot.slane %v634, 2
    %v636 = vadd.f32 %v634, %v635
    %v637 = vrot.slane %v636, 1
    %v638 = vadd.f32 %v636, %v637
    %v639 = vsel %vm206, %v569, 0.0
    %v640 = vrot.slane %v639, 4
    %v641 = vadd.f32 %v639, %v640
    %v642 = vrot.slane %v641, 2
    %v643 = vadd.f32 %v641, %v642
    %v644 = vrot.slane %v643, 1
    %v645 = vadd.f32 %v643, %v644
    %v646 = vsel %vm206, %v570, 0.0
    %v647 = vrot.slane %v646, 4
    %v648 = vadd.f32 %v646, %v647
    %v649 = vrot.slane %v648, 2
    %v650 = vadd.f32 %v648, %v649
    %v651 = vrot.slane %v650, 1
    %v652 = vadd.f32 %v650, %v651
    %v653 = vsel %vm206, %v571, 0.0
    %v654 = vrot.slane %v653, 4
    %v655 = vadd.f32 %v653, %v654
    %v656 = vrot.slane %v655, 2
    %v657 = vadd.f32 %v655, %v656
    %v658 = vrot.slane %v657, 1
    %v659 = vadd.f32 %v657, %v658
    %v660 = vsel %vm206, %v572, 0.0
    %v661 = vrot.slane %v660, 4
    %v662 = vadd.f32 %v660, %v661
    %v663 = vrot.slane %v662, 2
    %v664 = vadd.f32 %v662, %v663
    %v665 = vrot.slane %v664, 1
    %v666 = vadd.f32 %v664, %v665
    %v667 = vsel %vm206, %v573, 0.0
    %v668 = vrot.slane %v667, 4
    %v669 = vadd.f32 %v667, %v668
    %v670 = vrot.slane %v669, 2
    %v671 = vadd.f32 %v669, %v670
    %v672 = vrot.slane %v671, 1
    %v673 = vadd.f32 %v671, %v672
    %v674 = vsel %vm206, %v574, 0.0
    %v675 = vrot.slane %v674, 4
    %v676 = vadd.f32 %v674, %v675
    %v677 = vrot.slane %v676, 2
    %v678 = vadd.f32 %v676, %v677
    %v679 = vrot.slane %v678, 1
    %v680 = vadd.f32 %v678, %v679
    %v681 = vsel %vm206, %v575, 0.0
    %v682 = vrot.slane %v681, 4
    %v683 = vadd.f32 %v681, %v682
    %v684 = vrot.slane %v683, 2
    %v685 = vadd.f32 %v683, %v684
    %v686 = vrot.slane %v685, 1
    %v687 = vadd.f32 %v685, %v686
    %v688 = vld [vmem:[%s0] sm:$0xff]
    %v689 = vld [vmem:[%s0 + $0x8] sm:$0xff]
    %v690 = vld [vmem:[%s5] sm:$0x1]
    %v692 = vperm.slane %v690, 0
    %v694 = vmul.f32 %v688, %v692
    %v695 = vmul.f32 %v689, %v692
    %vm696 = vcmask 523264
    %v697 = vsel %vm696, %v694, 0.0
    %698 = vadd.xlane.f32.xlu0 %v697
    %v699 = vpop.xlane.xlu0 %698
    %v700 = vsel %vm696, %v695, 0.0
    %701 = vadd.xlane.f32.xlu0 %v700
    %v702 = vpop.xlane.xlu0 %701
    %v703 = vld [vmem:[%s6] sm:$0x1]
    %v705 = vperm.slane %v703, 0
    %v707 = vmul.f32 %v582, %v705
    %v708 = vmul.f32 %v589, %v705
    %v709 = vmul.f32 %v596, %v705
    %v710 = vmul.f32 %v603, %v705
    %v711 = vmul.f32 %v610, %v705
    %v712 = vmul.f32 %v617, %v705
    %v713 = vmul.f32 %v624, %v705
    %v714 = vmul.f32 %v631, %v705
    %v715 = vmul.f32 %v638, %v705
    %v716 = vmul.f32 %v645, %v705
    %v717 = vmul.f32 %v652, %v705
    %v718 = vmul.f32 %v659, %v705
    %v719 = vmul.f32 %v666, %v705
    %v720 = vmul.f32 %v673, %v705
    %v721 = vmul.f32 %v680, %v705
    %v722 = vmul.f32 %v687, %v705
    %v739 = vrot.slane %v708, 7
    %vm740 = vcmask 1041409
    %v741 = vsel %vm740, %v739, %v707
    %v742 = vrot.slane %v709, 6
    %vm743 = vcmask 1042434
    %v744 = vsel %vm743, %v742, %v741
    %v745 = vrot.slane %v710, 5
    %vm746 = vcmask 1043459
    %v747 = vsel %vm746, %v745, %v744
    %v748 = vrot.slane %v711, 4
    %vm749 = vcmask 1044484
    %v750 = vsel %vm749, %v748, %v747
    %v751 = vrot.slane %v712, 3
    %vm752 = vcmask 1045509
    %v753 = vsel %vm752, %v751, %v750
    %v754 = vrot.slane %v713, 2
    %vm755 = vcmask 1046534
    %v756 = vsel %vm755, %v754, %v753
    %v757 = vrot.slane %v714, 1
    %vm758 = vcmask 1047559
    %v759 = vsel %vm758, %v757, %v756
    %v760 = vrot.slane %v716, 7
    %v761 = vsel %vm740, %v760, %v715
    %v762 = vrot.slane %v717, 6
    %v763 = vsel %vm743, %v762, %v761
    %v764 = vrot.slane %v718, 5
    %v765 = vsel %vm746, %v764, %v763
    %v766 = vrot.slane %v719, 4
    %v767 = vsel %vm749, %v766, %v765
    %v768 = vrot.slane %v720, 3
    %v769 = vsel %vm752, %v768, %v767
    %v770 = vrot.slane %v721, 2
    %v771 = vsel %vm755, %v770, %v769
    %v772 = vrot.slane %v722, 1
    %v773 = vsel %vm758, %v772, %v771
    %v776 = vsel %vm696, %v759, 0.0
    %777 = vadd.xlane.f32.xlu0 %v776
    %v778 = vpop.xlane.xlu0 %777
    %v779 = vsel %vm696, %v773, 0.0
    %780 = vadd.xlane.f32.xlu0 %v779
    %v781 = vpop.xlane.xlu0 %780
    %v782 = vadd.f32 %v699, %v778
    %v783 = vadd.f32 %v702, %v781
    %v784 = vld [vmem:[#allocation2] sm:$0x1]
    %v786 = vperm.slane %v784, 0
    %v788 = vadd.f32 %v782, %v786
    %v789 = vadd.f32 %v783, %v786
    %v790 = vtanh.pop %v788
    %v791 = vtanh.pop %v789
    %vm792 = vcmask 7168
    %v793 = vsel %vm792, %v790, -inf
    %v794 = vrot.slane %v793, 4
    %v795 = vmax.f32 %v793, %v794
    %v796 = vrot.slane %v795, 2
    %v797 = vmax.f32 %v795, %v796
    %v798 = vrot.slane %v797, 1
    %v799 = vmax.f32 %v797, %v798
    %v800 = vsel %vm792, %v791, -inf
    %v801 = vrot.slane %v800, 4
    %v802 = vmax.f32 %v800, %v801
    %v803 = vrot.slane %v802, 2
    %v804 = vmax.f32 %v802, %v803
    %v805 = vrot.slane %v804, 1
    %v806 = vmax.f32 %v804, %v805
    %v807 = vsub.f32 %v790, %v799
    %v808 = vsub.f32 %v791, %v806
    %v809 = vmul.f32 %v807, 1.442695
    %v810 = vpow.pop %v809
    %v811 = vmul.f32 %v808, 1.442695
    %v812 = vpow.pop %v811
    %v813 = vsel %vm792, %v810, 0.0
    %v814 = vrot.slane %v813, 4
    %v815 = vadd.f32 %v813, %v814
    %v816 = vrot.slane %v815, 2
    %v817 = vadd.f32 %v815, %v816
    %v818 = vrot.slane %v817, 1
    %v819 = vadd.f32 %v817, %v818
    %v820 = vsel %vm792, %v812, 0.0
    %v821 = vrot.slane %v820, 4
    %v822 = vadd.f32 %v820, %v821
    %v823 = vrot.slane %v822, 2
    %v824 = vadd.f32 %v822, %v823
    %v825 = vrot.slane %v824, 1
    %v826 = vadd.f32 %v824, %v825
    %v827 = vrcp.pop %v819
    %v828 = vrcp.pop %v826
    %v829 = vmul.f32 %v810, %v827
    %v830 = vmul.f32 %v812, %v828
    %832 = vset.pattern.permute.xlu0 0
    %833 = vperm.xlu0 %832, %v829
    %v834 = vpop.permute.xlu0 %833
    %837 = vset.pattern.permute.xlu0 0
    %838 = vperm.xlu0 %837, %v830
    %v839 = vpop.permute.xlu0 %838
    %v841 = vmul.f32 %v834, %v688
    %v842 = vmul.f32 %v839, %v689
    %v843 = vsel %vm696, %v841, 0.0
    %v844 = vrot.slane %v843, 4
    %v845 = vadd.f32 %v843, %v844
    %v846 = vrot.slane %v845, 2
    %v847 = vadd.f32 %v845, %v846
    %v848 = vrot.slane %v847, 1
    %v849 = vadd.f32 %v847, %v848
    %v850 = vsel %vm696, %v842, 0.0
    %v851 = vrot.slane %v850, 4
    %v852 = vadd.f32 %v850, %v851
    %v853 = vrot.slane %v852, 2
    %v854 = vadd.f32 %v852, %v853
    %v855 = vrot.slane %v854, 1
    %v856 = vadd.f32 %v854, %v855
    %v873 = vsel %vm740, %v589, %v582
    %v874 = vsel %vm743, %v596, %v873
    %v875 = vsel %vm746, %v603, %v874
    %v876 = vsel %vm749, %v610, %v875
    %v877 = vsel %vm752, %v617, %v876
    %v878 = vsel %vm755, %v624, %v877
    %v879 = vsel %vm758, %v631, %v878
    %v880 = vsel %vm740, %v645, %v638
    %v881 = vsel %vm743, %v652, %v880
    %v882 = vsel %vm746, %v659, %v881
    %v883 = vsel %vm749, %v666, %v882
    %v884 = vsel %vm752, %v673, %v883
    %v885 = vsel %vm755, %v680, %v884
    %v886 = vsel %vm758, %v687, %v885
    %v889 = vmul.f32 %v834, %v879
    %v890 = vmul.f32 %v839, %v886
    %v891 = vsel %vm696, %v889, 0.0
    %v892 = vrot.slane %v891, 4
    %v893 = vadd.f32 %v891, %v892
    %v894 = vrot.slane %v893, 2
    %v895 = vadd.f32 %v893, %v894
    %v896 = vrot.slane %v895, 1
    %v897 = vadd.f32 %v895, %v896
    %v898 = vsel %vm696, %v890, 0.0
    %v899 = vrot.slane %v898, 4
    %v900 = vadd.f32 %v898, %v899
    %v901 = vrot.slane %v900, 2
    %v902 = vadd.f32 %v900, %v901
    %v903 = vrot.slane %v902, 1
    %v904 = vadd.f32 %v902, %v903
    %v905 = vld [vmem:[%s8] sm:$0xff]
    %v906 = vld [vmem:[%s8 + $0x8] sm:$0xff]
    %v907 = vld [vmem:[%s8 + $0x10] sm:$0xff]
    %v908 = vld [vmem:[%s8 + $0x18] sm:$0xff]
    %v909 = vld [vmem:[%s8 + $0x20] sm:$0xff]
    %v910 = vld [vmem:[%s8 + $0x28] sm:$0xff]
    %v911 = vld [vmem:[%s8 + $0x30] sm:$0xff]
    %v912 = vld [vmem:[%s8 + $0x38] sm:$0xff]
    %v913 = vld [vmem:[%s9] sm:$0xff]
    %v914 = vld [vmem:[%s9 + $0x8] sm:$0xff]
    %v915 = vld [vmem:[%s9 + $0x10] sm:$0xff]
    %v916 = vld [vmem:[%s9 + $0x18] sm:$0xff]
    %v917 = vld [vmem:[%s9 + $0x20] sm:$0xff]
    %v918 = vld [vmem:[%s9 + $0x28] sm:$0xff]
    %v919 = vld [vmem:[%s9 + $0x30] sm:$0xff]
    %v920 = vld [vmem:[%s9 + $0x38] sm:$0xff]
    %v923 = vsel %vm740, %v904, %v897
    %v924 = vsel %vm696, %v923, 0
    %926 = vmatpush.msra.mxu0 0.0
    %927 = vmatpush.msra.mxu0 0.0
    %928 = vmatpush.msra.mxu0 0.0
    %929 = vmatpush.msra.mxu0 0.0
    %930 = vmatpush.msra.mxu0 0.0
    %931 = vmatpush.msra.mxu0 0.0
    %932 = vmatpush.msra.mxu0 0.0
    %933 = vmatpush.msra.mxu0 0.0
    %934 = vmatpush.msra.mxu0 %v920
    %935 = vmatpush.msra.mxu0 %v919
    %936 = vmatpush.msra.mxu0 %v918
    %937 = vmatpush.msra.mxu0 %v917
    %938 = vmatpush.msra.mxu0 %v916
    %939 = vmatpush.msra.mxu0 %v915
    %940 = vmatpush.msra.mxu0 %v914
    %941 = vmatpush.msra.mxu0 %v913
    %942 = vmatmul.f32.gmra.mxu0 %v924
    %v943 = vpop.f32.mrf.mxu0
    %v944 = vadd.f32 0.0, %v943
    %945 = vdwg.mxu0
    %v948 = vsel %vm740, %v856, %v849
    %v949 = vsel %vm696, %v948, 0
    %951 = vmatpush.msra.mxu0 0.0
    %952 = vmatpush.msra.mxu0 0.0
    %953 = vmatpush.msra.mxu0 0.0
    %954 = vmatpush.msra.mxu0 0.0
    %955 = vmatpush.msra.mxu0 0.0
    %956 = vmatpush.msra.mxu0 0.0
    %957 = vmatpush.msra.mxu0 0.0
    %958 = vmatpush.msra.mxu0 0.0
    %959 = vmatpush.msra.mxu0 %v912
    %960 = vmatpush.msra.mxu0 %v911
    %961 = vmatpush.msra.mxu0 %v910
    %962 = vmatpush.msra.mxu0 %v909
    %963 = vmatpush.msra.mxu0 %v908
    %964 = vmatpush.msra.mxu0 %v907
    %965 = vmatpush.msra.mxu0 %v906
    %966 = vmatpush.msra.mxu0 %v905
    %967 = vmatmul.f32.gmra.mxu0 %v949
    %v968 = vpop.f32.mrf.mxu0
    %v969 = vadd.f32 %v944, %v968
    %970 = vdwg.mxu0
    %v971 = vld [vmem:[%s10] sm:$0x1]
    %v973 = vperm.slane %v971, 0
    %v975 = vadd.f32 %v969, %v973
    %vm976 = vcmask 17408
    %v977 = vsel %vm976, %v975, -inf
    %978 = vmax.xlane.f32.xlu0 %v977
    %v979 = vpop.xlane.xlu0 %978
    %v980 = vsub.f32 %v975, %v979
    %v981 = vmul.f32 %v980, 1.442695
    %v982 = vpow.pop %v981
    %v983 = vsel %vm976, %v982, 0.0
    %984 = vadd.xlane.f32.xlu0 %v983
    %v985 = vpop.xlane.xlu0 %984
    %v986 = vrcp.pop %v985
    %v987 = vmul.f32 %v985, %v986
    %v988 = vsub.f32 1.0, %v987
    %v989 = vmul.f32 %v986, %v988
    %v990 = vadd.f32 %v986, %v989
    %vm991 = vweird.f32 %v985
    %vm992 = vweird.f32 %v986
    %vm993 = vmor %vm991, %vm992
    %v994 = vsel %vm993, %v986, %v990
    %v995 = vand.u32 2147483647, %v985
    %vm996 = vcmp.eq.f32.partialorder %v995, 8.507059e+37
    %v997 = vand.u32 %v985, 2147483648
    %v998 = vor.u32 1.1754944e-38, %v997
    %v999 = vsel %vm996, %v998, %v994
    %v1000 = vmul.f32 %v982, %v999
    %v1002 = vrot.slane %v1000, 1
    %vm1004 = vcmask 16384
    %1005 = vst.msk [vmem:[#allocation3] sm:$0x1] %vm1004, %v1000
    %1006 = vst.msk [vmem:[#allocation3 + $0x1] sm:$0x1] %vm1004, %v1002
    // Predicated region
    $region46: #{forward.3} parent=1 // pred_check
      _
    $region47: #{forward.3} parent=1 // pred_check_branch
      %1008 = sbr.rel (0) target = $region49
    $region48: #{forward.3} parent=1 // pred_region
      %1010 = vsyncadd [#allocation4], 0
      %s1011 = sshll.u32 [#allocation3], 4
      %s1012 = int_to_ptr.vmem [resolvable:$true] %s1011
      %s1013 = sshll.u32 %s11, 4
      %s1014 = int_to_ptr.hbm [resolvable:$true] %s1013
      %1019 = dma.vmem_to_hbm [thread:$0]  %s1012, 32, %s1014, [#allocation4], 16, 16, 1
    $region49: #{forward.3} parent=1 // pred_fallthru
      _
    // Predicated region
    $region50: #{forward.3} parent=1 // pred_check
      _
    $region51: #{forward.3} parent=1 // pred_check_branch
      %1021 = sbr.rel (0) target = $region53
    $region52: #{forward.3} parent=1 // pred_region
      %1023 = dma.done [#allocation4], 32
    $region53: #{forward.3} parent=1 // pred_fallthru
      _
    %1024 = vsyncpa [#allocation4], 1

// kernel: forward.2
$region0: #{forward.2}
  #allocation0 [shape = 'u32[]', space=smem, size = 0x4, offset = 0x4, fixed_abs, tag = 'smem constant byte address 0x4 - core index']
  #allocation1 [shape = 'u32[72,128]{1,0:T(1,128)}', space=vmem, size = 0x9000, scoped, tag = 'internal scratch']
  %s0 = inlined_call_operand.vmem [shape: f32[2,8,64], index: 0, kind: input, shape index: {}]
  %s1 = inlined_call_operand.vmem [shape: bf16[64,384], index: 1, kind: input, shape index: {}]
  %s2 = inlined_call_operand.hbm [shape: f32[128,384], index: 2, kind: input, shape index: {}]
  %s3 = inlined_call_operand.vmem [shape: f32[1,384], index: 3, kind: input, shape index: {}]
  %s4 = inlined_call_operand.vmem [shape: f32[1,128], index: 4, kind: input, shape index: {}]
  %s5 = inlined_call_operand.vmem [shape: f32[2,8,128], index: 5, kind: output, shape index: {}]
  %s6 = sld [smem:[#allocation0]]
  $region34: #{forward.2} parent=0
    _
  %s8 = ssub.s32 1, %s6
  %s9 = scalar_select 0, %s8, %s6
  $region1: #{forward.2} parent=0
    #allocation2 [shape = 'u8[196608]{0}', space=vmem, size = 0x30000, scoped, tag = 'input window, operand 2, single buffered']
    #allocation3 [shape = 's32[1]{0}', space=sflag, size = 0x4, scoped, tag = 'scoped memory for forward.2']
    %10 = vsyncpa [#allocation3], 0
    // Predicated region
    $region2: #{forward.2} parent=1 // pred_check
      _
    $region3: #{forward.2} parent=1 // pred_check_branch
      %12 = sbr.rel (0) target = $region5
    $region4: #{forward.2} parent=1 // pred_region
      _
    $region5: #{forward.2} parent=1 // pred_fallthru
      _
    // Predicated region
    $region6: #{forward.2} parent=1 // pred_check
      _
    $region7: #{forward.2} parent=1 // pred_check_branch
      %14 = sbr.rel (0) target = $region9
    $region8: #{forward.2} parent=1 // pred_region
      _
    $region9: #{forward.2} parent=1 // pred_fallthru
      _
    // Predicated region
    $region10: #{forward.2} parent=1 // pred_check
      _
    $region11: #{forward.2} parent=1 // pred_check_branch
      %16 = sbr.rel (0) target = $region13
    $region12: #{forward.2} parent=1 // pred_region
      %18 = vsyncadd [#allocation3], 0
      %s19 = sshll.u32 %s2, 4
      %s20 = int_to_ptr.hbm [resolvable:$true] %s19
      %s21 = sshll.u32 [#allocation2], 4
      %s22 = int_to_ptr.vmem [resolvable:$true] %s21
      %27 = dma.hbm_to_vmem [thread:$0]  %s20, 6144, %s22, [#allocation3], 384, 384, 24
    $region13: #{forward.2} parent=1 // pred_fallthru
      _
    // Predicated region
    $region14: #{forward.2} parent=1 // pred_check
      _
    $region15: #{forward.2} parent=1 // pred_check_branch
      %29 = sbr.rel (0) target = $region17
    $region16: #{forward.2} parent=1 // pred_region
      _
    $region17: #{forward.2} parent=1 // pred_fallthru
      _
    // Predicated region
    $region18: #{forward.2} parent=1 // pred_check
      _
    $region19: #{forward.2} parent=1 // pred_check_branch
      %31 = sbr.rel (0) target = $region21
    $region20: #{forward.2} parent=1 // pred_region
      _
    $region21: #{forward.2} parent=1 // pred_fallthru
      _
    // Predicated region
    $region22: #{forward.2} parent=1 // pred_check
      _
    $region23: #{forward.2} parent=1 // pred_check_branch
      %33 = sbr.rel (0) target = $region25
    $region24: #{forward.2} parent=1 // pred_region
      %35 = dma.done [#allocation3], 6144
    $region25: #{forward.2} parent=1 // pred_fallthru
      _
    %v37 = vld [vmem:[%s0] sm:$0xff]
    %v38 = vld [vmem:[%s0 + $0x8] sm:$0xff]
    %v39 = vpack.c.bf16 %v38, %v37
    %v40 = vld [vmem:[%s1] sm:$0xff]
    %v41 = vld [vmem:[%s1 + $0x8] sm:$0xf]
    %v42 = vld [vmem:[%s1 + $0xc] sm:$0xff]
    %v43 = vld [vmem:[%s1 + $0x14] sm:$0xf]
    %v44 = vld [vmem:[%s1 + $0x18] sm:$0xff]
    %v45 = vld [vmem:[%s1 + $0x20] sm:$0xf]
    %v46 = vld [vmem:[%s1 + $0x24] sm:$0xff]
    %v47 = vld [vmem:[%s1 + $0x2c] sm:$0xf]
    %v48 = vld [vmem:[%s1 + $0x30] sm:$0xff]
    %v49 = vld [vmem:[%s1 + $0x38] sm:$0xf]
    %v50 = vld [vmem:[%s1 + $0x3c] sm:$0xff]
    %v51 = vld [vmem:[%s1 + $0x44] sm:$0xf]
    %v52 = vld [vmem:[%s1 + $0x48] sm:$0xff]
    %v53 = vld [vmem:[%s1 + $0x50] sm:$0xf]
    %v54 = vld [vmem:[%s1 + $0x54] sm:$0xff]
    %v55 = vld [vmem:[%s1 + $0x5c] sm:$0xf]
    %v56 = vld [vmem:[%s3] sm:$0x7]
    %v58 = vperm.slane %v56, 0
    %v59 = vperm.slane %v56, 1
    %v60 = vperm.slane %v56, 2
    %v80 = vunpack.c.l.b16 %v40
    %v81 = vunpack.c.h.b16 %v40
    %v82 = vunpack.c.l.b16 %v41
    %v83 = vunpack.c.l.b16 %v42
    %v84 = vunpack.c.h.b16 %v42
    %v85 = vunpack.c.l.b16 %v43
    %v86 = vunpack.c.l.b16 %v44
    %v87 = vunpack.c.h.b16 %v44
    %v88 = vunpack.c.l.b16 %v45
    %v89 = vunpack.c.l.b16 %v46
    %v90 = vunpack.c.h.b16 %v46
    %v91 = vunpack.c.l.b16 %v47
    %v92 = vunpack.c.l.b16 %v48
    %v93 = vunpack.c.h.b16 %v48
    %v94 = vunpack.c.l.b16 %v49
    %v95 = vunpack.c.l.b16 %v50
    %v96 = vunpack.c.h.b16 %v50
    %v97 = vunpack.c.l.b16 %v51
    %v98 = vunpack.c.l.b16 %v52
    %v99 = vunpack.c.h.b16 %v52
    %v100 = vunpack.c.l.b16 %v53
    %v101 = vunpack.c.l.b16 %v54
    %v102 = vunpack.c.h.b16 %v54
    %v103 = vunpack.c.l.b16 %v55
    %v104 = vpack.c.b16 %v83, %v80
    %v105 = vpack.c.b16 %v84, %v81
    %v106 = vpack.c.b16 %v85, %v82
    %v107 = vpack.c.b16 %v89, %v86
    %v108 = vpack.c.b16 %v90, %v87
    %v109 = vpack.c.b16 %v91, %v88
    %v110 = vpack.c.b16 %v95, %v92
    %v111 = vpack.c.b16 %v96, %v93
    %v112 = vpack.c.b16 %v97, %v94
    %v113 = vpack.c.b16 %v101, %v98
    %v114 = vpack.c.b16 %v102, %v99
    %v115 = vpack.c.b16 %v103, %v100
    %vm128 = vcmask 523264
    %v130 = vsel %vm128, %v39, 0
    %132 = vmatpush.bf16.msra.mxu0 0
    %133 = vmatpush.bf16.msra.mxu0 0
    %134 = vmatpush.bf16.msra.mxu0 0
    %135 = vmatpush.bf16.msra.mxu0 0
    %136 = vmatpush.bf16.msra.mxu0 %v113
    %137 = vmatpush.bf16.msra.mxu0 %v110
    %138 = vmatpush.bf16.msra.mxu0 %v107
    %139 = vmatpush.bf16.msra.mxu0 %v104
    %140 = vmatmul.bf16.gmra.mxu0 %v130
    %v141 = vpop.f32.mrf.mxu0
    %v142 = vadd.f32 %v58, %v141
    %v143 = vpop.f32.mrf.mxu0
    %v144 = vadd.f32 %v58, %v143
    %145 = vdwg.mxu0
    %146 = vmatpush.bf16.msra.mxu0 0
    %147 = vmatpush.bf16.msra.mxu0 0
    %148 = vmatpush.bf16.msra.mxu0 0
    %149 = vmatpush.bf16.msra.mxu0 0
    %150 = vmatpush.bf16.msra.mxu0 %v114
    %151 = vmatpush.bf16.msra.mxu0 %v111
    %152 = vmatpush.bf16.msra.mxu0 %v108
    %153 = vmatpush.bf16.msra.mxu0 %v105
    %154 = vmatmul.bf16.gmra.mxu0 %v130
    %v155 = vpop.f32.mrf.mxu0
    %v156 = vadd.f32 %v59, %v155
    %v157 = vpop.f32.mrf.mxu0
    %v158 = vadd.f32 %v59, %v157
    %159 = vdwg.mxu0
    %160 = vmatpush.bf16.msra.mxu0 0
    %161 = vmatpush.bf16.msra.mxu0 0
    %162 = vmatpush.bf16.msra.mxu0 0
    %163 = vmatpush.bf16.msra.mxu0 0
    %164 = vmatpush.bf16.msra.mxu0 %v115
    %165 = vmatpush.bf16.msra.mxu0 %v112
    %166 = vmatpush.bf16.msra.mxu0 %v109
    %167 = vmatpush.bf16.msra.mxu0 %v106
    %168 = vmatmul.bf16.gmra.mxu0 %v130
    %v169 = vpop.f32.mrf.mxu0
    %v170 = vadd.f32 %v60, %v169
    %v171 = vpop.f32.mrf.mxu0
    %v172 = vadd.f32 %v60, %v171
    %173 = vdwg.mxu0
    %v174 = vld [vmem:[#allocation2] sm:$0xff]
    %v175 = vld [vmem:[#allocation2 + $0x8] sm:$0xff]
    %v176 = vld [vmem:[#allocation2 + $0x10] sm:$0xff]
    %v177 = vld [vmem:[#allocation2 + $0x18] sm:$0xff]
    %v178 = vld [vmem:[#allocation2 + $0x20] sm:$0xff]
    %v179 = vld [vmem:[#allocation2 + $0x28] sm:$0xff]
    %v180 = vld [vmem:[#allocation2 + $0x30] sm:$0xff]
    %v181 = vld [vmem:[#allocation2 + $0x38] sm:$0xff]
    %v182 = vld [vmem:[#allocation2 + $0x40] sm:$0xff]
    %v183 = vld [vmem:[#allocation2 + $0x48] sm:$0xff]
    %v184 = vld [vmem:[#allocation2 + $0x50] sm:$0xff]
    %v185 = vld [vmem:[#allocation2 + $0x58] sm:$0xff]
    %v186 = vld [vmem:[#allocation2 + $0x60] sm:$0xff]
    %v187 = vld [vmem:[#allocation2 + $0x68] sm:$0xff]
    %v188 = vld [vmem:[#allocation2 + $0x70] sm:$0xff]
    %v189 = vld [vmem:[#allocation2 + $0x78] sm:$0xff]
    %v190 = vld [vmem:[#allocation2 + $0x80] sm:$0xff]
    %v191 = vld [vmem:[#allocation2 + $0x88] sm:$0xff]
    %v192 = vld [vmem:[#allocation2 + $0x90] sm:$0xff]
    %v193 = vld [vmem:[#allocation2 + $0x98] sm:$0xff]
    %v194 = vld [vmem:[#allocation2 + $0xa0] sm:$0xff]
    %v195 = vld [vmem:[#allocation2 + $0xa8] sm:$0xff]
    %v196 = vld [vmem:[#allocation2 + $0xb0] sm:$0xff]
    %v197 = vld [vmem:[#allocation2 + $0xb8] sm:$0xff]
    %v198 = vld [vmem:[#allocation2 + $0xc0] sm:$0xff]
    %v199 = vld [vmem:[#allocation2 + $0xc8] sm:$0xff]
    %v200 = vld [vmem:[#allocation2 + $0xd0] sm:$0xff]
    %v201 = vld [vmem:[#allocation2 + $0xd8] sm:$0xff]
    %v202 = vld [vmem:[#allocation2 + $0xe0] sm:$0xff]
    %v203 = vld [vmem:[#allocation2 + $0xe8] sm:$0xff]
    %v204 = vld [vmem:[#allocation2 + $0xf0] sm:$0xff]
    %v205 = vld [vmem:[#allocation2 + $0xf8] sm:$0xff]
    %v206 = vld [vmem:[#allocation2 + $0x100] sm:$0xff]
    %v207 = vld [vmem:[#allocation2 + $0x108] sm:$0xff]
    %v208 = vld [vmem:[#allocation2 + $0x110] sm:$0xff]
    %v209 = vld [vmem:[#allocation2 + $0x118] sm:$0xff]
    %v210 = vld [vmem:[#allocation2 + $0x120] sm:$0xff]
    %v211 = vld [vmem:[#allocation2 + $0x128] sm:$0xff]
    %v212 = vld [vmem:[#allocation2 + $0x130] sm:$0xff]
    %v213 = vld [vmem:[#allocation2 + $0x138] sm:$0xff]
    %v214 = vld [vmem:[#allocation2 + $0x140] sm:$0xff]
    %v215 = vld [vmem:[#allocation2 + $0x148] sm:$0xff]
    %v216 = vld [vmem:[#allocation2 + $0x150] sm:$0xff]
    %v217 = vld [vmem:[#allocation2 + $0x158] sm:$0xff]
    %v218 = vld [vmem:[#allocation2 + $0x160] sm:$0xff]
    %v219 = vld [vmem:[#allocation2 + $0x168] sm:$0xff]
    %v220 = vld [vmem:[#allocation2 + $0x170] sm:$0xff]
    %v221 = vld [vmem:[#allocation2 + $0x178] sm:$0xff]
    %v222 = vld [vmem:[%s4] sm:$0x1]
    %v224 = vperm.slane %v222, 0
    %v226 = vlaneseq
    %v227 = vand.u32 %v226, 127
    %vm228 = vcmp.lt.s32.totalorder %v227, 32
    %229 = vmatpush.msra.mxu0 %v219
    %230 = vmatpush.msra.mxu0 %v216
    %231 = vmatpush.msra.mxu0 %v213
    %232 = vmatpush.msra.mxu0 %v210
    %233 = vmatpush.msra.mxu0 %v207
    %234 = vmatpush.msra.mxu0 %v204
    %235 = vmatpush.msra.mxu0 %v201
    %236 = vmatpush.msra.mxu0 %v198
    %237 = vmatpush.msra.mxu0 %v195
    %238 = vmatpush.msra.mxu0 %v192
    %239 = vmatpush.msra.mxu0 %v189
    %240 = vmatpush.msra.mxu0 %v186
    %241 = vmatpush.msra.mxu0 %v183
    %242 = vmatpush.msra.mxu0 %v180
    %243 = vmatpush.msra.mxu0 %v177
    %244 = vmatpush.msra.mxu0 %v174
    %245 = vmatmul.f32.gmra.mxu0 0.0
    %v246 = vpop.f32.mrf.mxu0
    %v247 = vadd.f32 0.0, %v246
    %248 = vdwg.mxu0
    %249 = vmatpush.msra.mxu0 %v220
    %250 = vmatpush.msra.mxu0 %v217
    %251 = vmatpush.msra.mxu0 %v214
    %252 = vmatpush.msra.mxu0 %v211
    %253 = vmatpush.msra.mxu0 %v208
    %254 = vmatpush.msra.mxu0 %v205
    %255 = vmatpush.msra.mxu0 %v202
    %256 = vmatpush.msra.mxu0 %v199
    %257 = vmatpush.msra.mxu0 %v196
    %258 = vmatpush.msra.mxu0 %v193
    %259 = vmatpush.msra.mxu0 %v190
    %260 = vmatpush.msra.mxu0 %v187
    %261 = vmatpush.msra.mxu0 %v184
    %262 = vmatpush.msra.mxu0 %v181
    %263 = vmatpush.msra.mxu0 %v178
    %264 = vmatpush.msra.mxu0 %v175
    %265 = vmatmul.f32.gmra.mxu0 0.0
    %v266 = vpop.f32.mrf.mxu0
    %v267 = vadd.f32 0.0, %v266
    %268 = vdwg.mxu0
    %269 = vmatpush.msra.mxu0 %v221
    %270 = vmatpush.msra.mxu0 %v218
    %271 = vmatpush.msra.mxu0 %v215
    %272 = vmatpush.msra.mxu0 %v212
    %273 = vmatpush.msra.mxu0 %v209
    %274 = vmatpush.msra.mxu0 %v206
    %275 = vmatpush.msra.mxu0 %v203
    %276 = vmatpush.msra.mxu0 %v200
    %277 = vmatpush.msra.mxu0 %v197
    %278 = vmatpush.msra.mxu0 %v194
    %279 = vmatpush.msra.mxu0 %v191
    %280 = vmatpush.msra.mxu0 %v188
    %281 = vmatpush.msra.mxu0 %v185
    %282 = vmatpush.msra.mxu0 %v182
    %283 = vmatpush.msra.mxu0 %v179
    %284 = vmatpush.msra.mxu0 %v176
    %285 = vmatmul.f32.gmra.mxu0 0.0
    %v286 = vpop.f32.mrf.mxu0
    %v287 = vadd.f32 0.0, %v286
    %288 = vdwg.mxu0
    %v289 = vsel %vm228, 1, 0
    %v290 = vperm.slane %v289, 0
    %vm291 = vcmp.eq.s32.totalorder %v290, 1
    %v298 = vrot.slane %v144, 7
    %vm299 = vcmask 1041409
    %v300 = vsel %vm299, %v298, %v142
    %v301 = vrot.slane %v158, 7
    %v302 = vsel %vm299, %v301, %v156
    %v303 = vrot.slane %v172, 7
    %v304 = vsel %vm299, %v303, %v170
    %v308 = vrot.slane %v142, 7
    %v309 = vrot.slane %v144, 6
    %v310 = vsel %vm299, %v309, %v308
    %v311 = vrot.slane %v156, 7
    %v312 = vrot.slane %v158, 6
    %v313 = vsel %vm299, %v312, %v311
    %v314 = vrot.slane %v170, 7
    %v315 = vrot.slane %v172, 6
    %v316 = vsel %vm299, %v315, %v314
    %v320 = vsel %vm291, %v300, %v310
    %v321 = vsel %vm291, %v302, %v313
    %v322 = vsel %vm291, %v304, %v316
    %v323 = vadd.f32 %v320, %v247
    %v324 = vxor.u32 %v323, 2147483648
    %v325 = vmul.f32 %v324, 1.442695
    %v326 = vpow.pop %v325
    %v327 = vadd.f32 %v326, 1.0
    %v328 = vrcp.pop %v327
    %v329 = vmul.f32 %v327, %v328
    %v330 = vsub.f32 1.0, %v329
    %v331 = vmul.f32 %v328, %v330
    %v332 = vadd.f32 %v328, %v331
    %vm333 = vweird.f32 %v327
    %vm334 = vweird.f32 %v328
    %vm335 = vmor %vm333, %vm334
    %v336 = vsel %vm335, %v328, %v332
    %v337 = vand.u32 2147483647, %v327
    %vm338 = vcmp.eq.f32.partialorder %v337, 8.507059e+37
    %v339 = vand.u32 %v327, 2147483648
    %v340 = vor.u32 1.1754944e-38, %v339
    %v341 = vsel %vm338, %v340, %v336
    %v342 = vmul.f32 1.0, %v341
    %v343 = vadd.f32 %v321, %v267
    %v344 = vxor.u32 %v343, 2147483648
    %v345 = vmul.f32 %v344, 1.442695
    %v346 = vpow.pop %v345
    %v347 = vadd.f32 %v346, 1.0
    %v348 = vrcp.pop %v347
    %v349 = vmul.f32 %v347, %v348
    %v350 = vsub.f32 1.0, %v349
    %v351 = vmul.f32 %v348, %v350
    %v352 = vadd.f32 %v348, %v351
    %vm353 = vweird.f32 %v347
    %vm354 = vweird.f32 %v348
    %vm355 = vmor %vm353, %vm354
    %v356 = vsel %vm355, %v348, %v352
    %v357 = vand.u32 2147483647, %v347
    %vm358 = vcmp.eq.f32.partialorder %v357, 8.507059e+37
    %v359 = vand.u32 %v347, 2147483648
    %v360 = vor.u32 1.1754944e-38, %v359
    %v361 = vsel %vm358, %v360, %v356
    %v362 = vmul.f32 1.0, %v361
    %v363 = vadd.f32 %v287, %v224
    %v364 = vmul.f32 %v342, %v363
    %v365 = vadd.f32 %v322, %v364
    %v366 = vtanh.pop %v365
    %v367 = vsub.f32 1.0, %v362
    %v368 = vmul.f32 %v367, %v366
    %v369 = vmul.f32 %v362, 0.0
    %v370 = vadd.f32 %v368, %v369
    %371 = vmatpush.msra.mxu0 %v219
    %372 = vmatpush.msra.mxu0 %v216
    %373 = vmatpush.msra.mxu0 %v213
    %374 = vmatpush.msra.mxu0 %v210
    %375 = vmatpush.msra.mxu0 %v207
    %376 = vmatpush.msra.mxu0 %v204
    %377 = vmatpush.msra.mxu0 %v201
    %378 = vmatpush.msra.mxu0 %v198
    %379 = vmatpush.msra.mxu0 %v195
    %380 = vmatpush.msra.mxu0 %v192
    %381 = vmatpush.msra.mxu0 %v189
    %382 = vmatpush.msra.mxu0 %v186
    %383 = vmatpush.msra.mxu0 %v183
    %384 = vmatpush.msra.mxu0 %v180
    %385 = vmatpush.msra.mxu0 %v177
    %386 = vmatpush.msra.mxu0 %v174
    %387 = vmatmul.f32.gmra.mxu0 %v370
    %v388 = vpop.f32.mrf.mxu0
    %v389 = vadd.f32 0.0, %v388
    %390 = vdwg.mxu0
    %391 = vmatpush.msra.mxu0 %v220
    %392 = vmatpush.msra.mxu0 %v217
    %393 = vmatpush.msra.mxu0 %v214
    %394 = vmatpush.msra.mxu0 %v211
    %395 = vmatpush.msra.mxu0 %v208
    %396 = vmatpush.msra.mxu0 %v205
    %397 = vmatpush.msra.mxu0 %v202
    %398 = vmatpush.msra.mxu0 %v199
    %399 = vmatpush.msra.mxu0 %v196
    %400 = vmatpush.msra.mxu0 %v193
    %401 = vmatpush.msra.mxu0 %v190
    %402 = vmatpush.msra.mxu0 %v187
    %403 = vmatpush.msra.mxu0 %v184
    %404 = vmatpush.msra.mxu0 %v181
    %405 = vmatpush.msra.mxu0 %v178
    %406 = vmatpush.msra.mxu0 %v175
    %407 = vmatmul.f32.gmra.mxu0 %v370
    %v408 = vpop.f32.mrf.mxu0
    %v409 = vadd.f32 0.0, %v408
    %410 = vdwg.mxu0
    %411 = vmatpush.msra.mxu0 %v221
    %412 = vmatpush.msra.mxu0 %v218
    %413 = vmatpush.msra.mxu0 %v215
    %414 = vmatpush.msra.mxu0 %v212
    %415 = vmatpush.msra.mxu0 %v209
    %416 = vmatpush.msra.mxu0 %v206
    %417 = vmatpush.msra.mxu0 %v203
    %418 = vmatpush.msra.mxu0 %v200
    %419 = vmatpush.msra.mxu0 %v197
    %420 = vmatpush.msra.mxu0 %v194
    %421 = vmatpush.msra.mxu0 %v191
    %422 = vmatpush.msra.mxu0 %v188
    %423 = vmatpush.msra.mxu0 %v185
    %424 = vmatpush.msra.mxu0 %v182
    %425 = vmatpush.msra.mxu0 %v179
    %426 = vmatpush.msra.mxu0 %v176
    %427 = vmatmul.f32.gmra.mxu0 %v370
    %v428 = vpop.f32.mrf.mxu0
    %v429 = vadd.f32 0.0, %v428
    %430 = vdwg.mxu0
    %v431 = vrot.slane %v142, 1
    %v432 = vsel %vm299, %v144, %v431
    %v433 = vrot.slane %v156, 1
    %v434 = vsel %vm299, %v158, %v433
    %v435 = vrot.slane %v170, 1
    %v436 = vsel %vm299, %v172, %v435
    %v440 = vrot.slane %v142, 6
    %v441 = vrot.slane %v144, 5
    %v442 = vsel %vm299, %v441, %v440
    %v443 = vrot.slane %v156, 6
    %v444 = vrot.slane %v158, 5
    %v445 = vsel %vm299, %v444, %v443
    %v446 = vrot.slane %v170, 6
    %v447 = vrot.slane %v172, 5
    %v448 = vsel %vm299, %v447, %v446
    %v452 = vsel %vm291, %v432, %v442
    %v453 = vsel %vm291, %v434, %v445
    %v454 = vsel %vm291, %v436, %v448
    %v455 = vadd.f32 %v452, %v389
    %v456 = vxor.u32 %v455, 2147483648
    %v457 = vmul.f32 %v456, 1.442695
    %v458 = vpow.pop %v457
    %v459 = vadd.f32 %v458, 1.0
    %v460 = vrcp.pop %v459
    %v461 = vmul.f32 %v459, %v460
    %v462 = vsub.f32 1.0, %v461
    %v463 = vmul.f32 %v460, %v462
    %v464 = vadd.f32 %v460, %v463
    %vm465 = vweird.f32 %v459
    %vm466 = vweird.f32 %v460
    %vm467 = vmor %vm465, %vm466
    %v468 = vsel %vm467, %v460, %v464
    %v469 = vand.u32 2147483647, %v459
    %vm470 = vcmp.eq.f32.partialorder %v469, 8.507059e+37
    %v471 = vand.u32 %v459, 2147483648
    %v472 = vor.u32 1.1754944e-38, %v471
    %v473 = vsel %vm470, %v472, %v468
    %v474 = vmul.f32 1.0, %v473
    %v475 = vadd.f32 %v453, %v409
    %v476 = vxor.u32 %v475, 2147483648
    %v477 = vmul.f32 %v476, 1.442695
    %v478 = vpow.pop %v477
    %v479 = vadd.f32 %v478, 1.0
    %v480 = vrcp.pop %v479
    %v481 = vmul.f32 %v479, %v480
    %v482 = vsub.f32 1.0, %v481
    %v483 = vmul.f32 %v480, %v482
    %v484 = vadd.f32 %v480, %v483
    %vm485 = vweird.f32 %v479
    %vm486 = vweird.f32 %v480
    %vm487 = vmor %vm485, %vm486
    %v488 = vsel %vm487, %v480, %v484
    %v489 = vand.u32 2147483647, %v479
    %vm490 = vcmp.eq.f32.partialorder %v489, 8.507059e+37
    %v491 = vand.u32 %v479, 2147483648
    %v492 = vor.u32 1.1754944e-38, %v491
    %v493 = vsel %vm490, %v492, %v488
    %v494 = vmul.f32 1.0, %v493
    %v495 = vadd.f32 %v429, %v224
    %v496 = vmul.f32 %v474, %v495
    %v497 = vadd.f32 %v454, %v496
    %v498 = vtanh.pop %v497
    %v499 = vsub.f32 1.0, %v494
    %v500 = vmul.f32 %v499, %v498
    %v501 = vmul.f32 %v494, %v370
    %v502 = vadd.f32 %v500, %v501
    %503 = vmatpush.msra.mxu0 %v219
    %504 = vmatpush.msra.mxu0 %v216
    %505 = vmatpush.msra.mxu0 %v213
    %506 = vmatpush.msra.mxu0 %v210
    %507 = vmatpush.msra.mxu0 %v207
    %508 = vmatpush.msra.mxu0 %v204
    %509 = vmatpush.msra.mxu0 %v201
    %510 = vmatpush.msra.mxu0 %v198
    %511 = vmatpush.msra.mxu0 %v195
    %512 = vmatpush.msra.mxu0 %v192
    %513 = vmatpush.msra.mxu0 %v189
    %514 = vmatpush.msra.mxu0 %v186
    %515 = vmatpush.msra.mxu0 %v183
    %516 = vmatpush.msra.mxu0 %v180
    %517 = vmatpush.msra.mxu0 %v177
    %518 = vmatpush.msra.mxu0 %v174
    %519 = vmatmul.f32.gmra.mxu0 %v502
    %v520 = vpop.f32.mrf.mxu0
    %v521 = vadd.f32 0.0, %v520
    %522 = vdwg.mxu0
    %523 = vmatpush.msra.mxu0 %v220
    %524 = vmatpush.msra.mxu0 %v217
    %525 = vmatpush.msra.mxu0 %v214
    %526 = vmatpush.msra.mxu0 %v211
    %527 = vmatpush.msra.mxu0 %v208
    %528 = vmatpush.msra.mxu0 %v205
    %529 = vmatpush.msra.mxu0 %v202
    %530 = vmatpush.msra.mxu0 %v199
    %531 = vmatpush.msra.mxu0 %v196
    %532 = vmatpush.msra.mxu0 %v193
    %533 = vmatpush.msra.mxu0 %v190
    %534 = vmatpush.msra.mxu0 %v187
    %535 = vmatpush.msra.mxu0 %v184
    %536 = vmatpush.msra.mxu0 %v181
    %537 = vmatpush.msra.mxu0 %v178
    %538 = vmatpush.msra.mxu0 %v175
    %539 = vmatmul.f32.gmra.mxu0 %v502
    %v540 = vpop.f32.mrf.mxu0
    %v541 = vadd.f32 0.0, %v540
    %542 = vdwg.mxu0
    %543 = vmatpush.msra.mxu0 %v221
    %544 = vmatpush.msra.mxu0 %v218
    %545 = vmatpush.msra.mxu0 %v215
    %546 = vmatpush.msra.mxu0 %v212
    %547 = vmatpush.msra.mxu0 %v209
    %548 = vmatpush.msra.mxu0 %v206
    %549 = vmatpush.msra.mxu0 %v203
    %550 = vmatpush.msra.mxu0 %v200
    %551 = vmatpush.msra.mxu0 %v197
    %552 = vmatpush.msra.mxu0 %v194
    %553 = vmatpush.msra.mxu0 %v191
    %554 = vmatpush.msra.mxu0 %v188
    %555 = vmatpush.msra.mxu0 %v185
    %556 = vmatpush.msra.mxu0 %v182
    %557 = vmatpush.msra.mxu0 %v179
    %558 = vmatpush.msra.mxu0 %v176
    %559 = vmatmul.f32.gmra.mxu0 %v502
    %v560 = vpop.f32.mrf.mxu0
    %v561 = vadd.f32 0.0, %v560
    %562 = vdwg.mxu0
    %v563 = vrot.slane %v142, 2
    %v564 = vrot.slane %v144, 1
    %v565 = vsel %vm299, %v564, %v563
    %v566 = vrot.slane %v156, 2
    %v567 = vrot.slane %v158, 1
    %v568 = vsel %vm299, %v567, %v566
    %v569 = vrot.slane %v170, 2
    %v570 = vrot.slane %v172, 1
    %v571 = vsel %vm299, %v570, %v569
    %v575 = vrot.slane %v142, 5
    %v576 = vrot.slane %v144, 4
    %v577 = vsel %vm299, %v576, %v575
    %v578 = vrot.slane %v156, 5
    %v579 = vrot.slane %v158, 4
    %v580 = vsel %vm299, %v579, %v578
    %v581 = vrot.slane %v170, 5
    %v582 = vrot.slane %v172, 4
    %v583 = vsel %vm299, %v582, %v581
    %v587 = vsel %vm291, %v565, %v577
    %v588 = vsel %vm291, %v568, %v580
    %v589 = vsel %vm291, %v571, %v583
    %v590 = vadd.f32 %v587, %v521
    %v591 = vxor.u32 %v590, 2147483648
    %v592 = vmul.f32 %v591, 1.442695
    %v593 = vpow.pop %v592
    %v594 = vadd.f32 %v593, 1.0
    %v595 = vrcp.pop %v594
    %v596 = vmul.f32 %v594, %v595
    %v597 = vsub.f32 1.0, %v596
    %v598 = vmul.f32 %v595, %v597
    %v599 = vadd.f32 %v595, %v598
    %vm600 = vweird.f32 %v594
    %vm601 = vweird.f32 %v595
    %vm602 = vmor %vm600, %vm601
    %v603 = vsel %vm602, %v595, %v599
    %v604 = vand.u32 2147483647, %v594
    %vm605 = vcmp.eq.f32.partialorder %v604, 8.507059e+37
    %v606 = vand.u32 %v594, 2147483648
    %v607 = vor.u32 1.1754944e-38, %v606
    %v608 = vsel %vm605, %v607, %v603
    %v609 = vmul.f32 1.0, %v608
    %v610 = vadd.f32 %v588, %v541
    %v611 = vxor.u32 %v610, 2147483648
    %v612 = vmul.f32 %v611, 1.442695
    %v613 = vpow.pop %v612
    %v614 = vadd.f32 %v613, 1.0
    %v615 = vrcp.pop %v614
    %v616 = vmul.f32 %v614, %v615
    %v617 = vsub.f32 1.0, %v616
    %v618 = vmul.f32 %v615, %v617
    %v619 = vadd.f32 %v615, %v618
    %vm620 = vweird.f32 %v614
    %vm621 = vweird.f32 %v615
    %vm622 = vmor %vm620, %vm621
    %v623 = vsel %vm622, %v615, %v619
    %v624 = vand.u32 2147483647, %v614
    %vm625 = vcmp.eq.f32.partialorder %v624, 8.507059e+37
    %v626 = vand.u32 %v614, 2147483648
    %v627 = vor.u32 1.1754944e-38, %v626
    %v628 = vsel %vm625, %v627, %v623
    %v629 = vmul.f32 1.0, %v628
    %v630 = vadd.f32 %v561, %v224
    %v631 = vmul.f32 %v609, %v630
    %v632 = vadd.f32 %v589, %v631
    %v633 = vtanh.pop %v632
    %v634 = vsub.f32 1.0, %v629
    %v635 = vmul.f32 %v634, %v633
    %v636 = vmul.f32 %v629, %v502
    %v637 = vadd.f32 %v635, %v636
    %638 = vmatpush.msra.mxu0 %v219
    %639 = vmatpush.msra.mxu0 %v216
    %640 = vmatpush.msra.mxu0 %v213
    %641 = vmatpush.msra.mxu0 %v210
    %642 = vmatpush.msra.mxu0 %v207
    %643 = vmatpush.msra.mxu0 %v204
    %644 = vmatpush.msra.mxu0 %v201
    %645 = vmatpush.msra.mxu0 %v198
    %646 = vmatpush.msra.mxu0 %v195
    %647 = vmatpush.msra.mxu0 %v192
    %648 = vmatpush.msra.mxu0 %v189
    %649 = vmatpush.msra.mxu0 %v186
    %650 = vmatpush.msra.mxu0 %v183
    %651 = vmatpush.msra.mxu0 %v180
    %652 = vmatpush.msra.mxu0 %v177
    %653 = vmatpush.msra.mxu0 %v174
    %654 = vmatmul.f32.gmra.mxu0 %v637
    %v655 = vpop.f32.mrf.mxu0
    %v656 = vadd.f32 0.0, %v655
    %657 = vdwg.mxu0
    %658 = vmatpush.msra.mxu0 %v220
    %659 = vmatpush.msra.mxu0 %v217
    %660 = vmatpush.msra.mxu0 %v214
    %661 = vmatpush.msra.mxu0 %v211
    %662 = vmatpush.msra.mxu0 %v208
    %663 = vmatpush.msra.mxu0 %v205
    %664 = vmatpush.msra.mxu0 %v202
    %665 = vmatpush.msra.mxu0 %v199
    %666 = vmatpush.msra.mxu0 %v196
    %667 = vmatpush.msra.mxu0 %v193
    %668 = vmatpush.msra.mxu0 %v190
    %669 = vmatpush.msra.mxu0 %v187
    %670 = vmatpush.msra.mxu0 %v184
    %671 = vmatpush.msra.mxu0 %v181
    %672 = vmatpush.msra.mxu0 %v178
    %673 = vmatpush.msra.mxu0 %v175
    %674 = vmatmul.f32.gmra.mxu0 %v637
    %v675 = vpop.f32.mrf.mxu0
    %v676 = vadd.f32 0.0, %v675
    %677 = vdwg.mxu0
    %678 = vmatpush.msra.mxu0 %v221
    %679 = vmatpush.msra.mxu0 %v218
    %680 = vmatpush.msra.mxu0 %v215
    %681 = vmatpush.msra.mxu0 %v212
    %682 = vmatpush.msra.mxu0 %v209
    %683 = vmatpush.msra.mxu0 %v206
    %684 = vmatpush.msra.mxu0 %v203
    %685 = vmatpush.msra.mxu0 %v200
    %686 = vmatpush.msra.mxu0 %v197
    %687 = vmatpush.msra.mxu0 %v194
    %688 = vmatpush.msra.mxu0 %v191
    %689 = vmatpush.msra.mxu0 %v188
    %690 = vmatpush.msra.mxu0 %v185
    %691 = vmatpush.msra.mxu0 %v182
    %692 = vmatpush.msra.mxu0 %v179
    %693 = vmatpush.msra.mxu0 %v176
    %694 = vmatmul.f32.gmra.mxu0 %v637
    %v695 = vpop.f32.mrf.mxu0
    %v696 = vadd.f32 0.0, %v695
    %697 = vdwg.mxu0
    %v698 = vrot.slane %v142, 3
    %v699 = vrot.slane %v144, 2
    %v700 = vsel %vm299, %v699, %v698
    %v701 = vrot.slane %v156, 3
    %v702 = vrot.slane %v158, 2
    %v703 = vsel %vm299, %v702, %v701
    %v704 = vrot.slane %v170, 3
    %v705 = vrot.slane %v172, 2
    %v706 = vsel %vm299, %v705, %v704
    %v710 = vrot.slane %v142, 4
    %v711 = vrot.slane %v144, 3
    %v712 = vsel %vm299, %v711, %v710
    %v713 = vrot.slane %v156, 4
    %v714 = vrot.slane %v158, 3
    %v715 = vsel %vm299, %v714, %v713
    %v716 = vrot.slane %v170, 4
    %v717 = vrot.slane %v172, 3
    %v718 = vsel %vm299, %v717, %v716
    %v722 = vsel %vm291, %v700, %v712
    %v723 = vsel %vm291, %v703, %v715
    %v724 = vsel %vm291, %v706, %v718
    %v725 = vadd.f32 %v722, %v656
    %v726 = vxor.u32 %v725, 2147483648
    %v727 = vmul.f32 %v726, 1.442695
    %v728 = vpow.pop %v727
    %v729 = vadd.f32 %v728, 1.0
    %v730 = vrcp.pop %v729
    %v731 = vmul.f32 %v729, %v730
    %v732 = vsub.f32 1.0, %v731
    %v733 = vmul.f32 %v730, %v732
    %v734 = vadd.f32 %v730, %v733
    %vm735 = vweird.f32 %v729
    %vm736 = vweird.f32 %v730
    %vm737 = vmor %vm735, %vm736
    %v738 = vsel %vm737, %v730, %v734
    %v739 = vand.u32 2147483647, %v729
    %vm740 = vcmp.eq.f32.partialorder %v739, 8.507059e+37
    %v741 = vand.u32 %v729, 2147483648
    %v742 = vor.u32 1.1754944e-38, %v741
    %v743 = vsel %vm740, %v742, %v738
    %v744 = vmul.f32 1.0, %v743
    %v745 = vadd.f32 %v723, %v676
    %v746 = vxor.u32 %v745, 2147483648
    %v747 = vmul.f32 %v746, 1.442695
    %v748 = vpow.pop %v747
    %v749 = vadd.f32 %v748, 1.0
    %v750 = vrcp.pop %v749
    %v751 = vmul.f32 %v749, %v750
    %v752 = vsub.f32 1.0, %v751
    %v753 = vmul.f32 %v750, %v752
    %v754 = vadd.f32 %v750, %v753
    %vm755 = vweird.f32 %v749
    %vm756 = vweird.f32 %v750
    %vm757 = vmor %vm755, %vm756
    %v758 = vsel %vm757, %v750, %v754
    %v759 = vand.u32 2147483647, %v749
    %vm760 = vcmp.eq.f32.partialorder %v759, 8.507059e+37
    %v761 = vand.u32 %v749, 2147483648
    %v762 = vor.u32 1.1754944e-38, %v761
    %v763 = vsel %vm760, %v762, %v758
    %v764 = vmul.f32 1.0, %v763
    %v765 = vadd.f32 %v696, %v224
    %v766 = vmul.f32 %v744, %v765
    %v767 = vadd.f32 %v724, %v766
    %v768 = vtanh.pop %v767
    %v769 = vsub.f32 1.0, %v764
    %v770 = vmul.f32 %v769, %v768
    %v771 = vmul.f32 %v764, %v637
    %v772 = vadd.f32 %v770, %v771
    %773 = vmatpush.msra.mxu0 %v219
    %774 = vmatpush.msra.mxu0 %v216
    %775 = vmatpush.msra.mxu0 %v213
    %776 = vmatpush.msra.mxu0 %v210
    %777 = vmatpush.msra.mxu0 %v207
    %778 = vmatpush.msra.mxu0 %v204
    %779 = vmatpush.msra.mxu0 %v201
    %780 = vmatpush.msra.mxu0 %v198
    %781 = vmatpush.msra.mxu0 %v195
    %782 = vmatpush.msra.mxu0 %v192
    %783 = vmatpush.msra.mxu0 %v189
    %784 = vmatpush.msra.mxu0 %v186
    %785 = vmatpush.msra.mxu0 %v183
    %786 = vmatpush.msra.mxu0 %v180
    %787 = vmatpush.msra.mxu0 %v177
    %788 = vmatpush.msra.mxu0 %v174
    %789 = vmatmul.f32.gmra.mxu0 %v772
    %v790 = vpop.f32.mrf.mxu0
    %v791 = vadd.f32 0.0, %v790
    %792 = vdwg.mxu0
    %793 = vmatpush.msra.mxu0 %v220
    %794 = vmatpush.msra.mxu0 %v217
    %795 = vmatpush.msra.mxu0 %v214
    %796 = vmatpush.msra.mxu0 %v211
    %797 = vmatpush.msra.mxu0 %v208
    %798 = vmatpush.msra.mxu0 %v205
    %799 = vmatpush.msra.mxu0 %v202
    %800 = vmatpush.msra.mxu0 %v199
    %801 = vmatpush.msra.mxu0 %v196
    %802 = vmatpush.msra.mxu0 %v193
    %803 = vmatpush.msra.mxu0 %v190
    %804 = vmatpush.msra.mxu0 %v187
    %805 = vmatpush.msra.mxu0 %v184
    %806 = vmatpush.msra.mxu0 %v181
    %807 = vmatpush.msra.mxu0 %v178
    %808 = vmatpush.msra.mxu0 %v175
    %809 = vmatmul.f32.gmra.mxu0 %v772
    %v810 = vpop.f32.mrf.mxu0
    %v811 = vadd.f32 0.0, %v810
    %812 = vdwg.mxu0
    %813 = vmatpush.msra.mxu0 %v221
    %814 = vmatpush.msra.mxu0 %v218
    %815 = vmatpush.msra.mxu0 %v215
    %816 = vmatpush.msra.mxu0 %v212
    %817 = vmatpush.msra.mxu0 %v209
    %818 = vmatpush.msra.mxu0 %v206
    %819 = vmatpush.msra.mxu0 %v203
    %820 = vmatpush.msra.mxu0 %v200
    %821 = vmatpush.msra.mxu0 %v197
    %822 = vmatpush.msra.mxu0 %v194
    %823 = vmatpush.msra.mxu0 %v191
    %824 = vmatpush.msra.mxu0 %v188
    %825 = vmatpush.msra.mxu0 %v185
    %826 = vmatpush.msra.mxu0 %v182
    %827 = vmatpush.msra.mxu0 %v179
    %828 = vmatpush.msra.mxu0 %v176
    %829 = vmatmul.f32.gmra.mxu0 %v772
    %v830 = vpop.f32.mrf.mxu0
    %v831 = vadd.f32 0.0, %v830
    %832 = vdwg.mxu0
    %v833 = vsel %vm291, %v712, %v700
    %v834 = vsel %vm291, %v715, %v703
    %v835 = vsel %vm291, %v718, %v706
    %v836 = vadd.f32 %v833, %v791
    %v837 = vxor.u32 %v836, 2147483648
    %v838 = vmul.f32 %v837, 1.442695
    %v839 = vpow.pop %v838
    %v840 = vadd.f32 %v839, 1.0
    %v841 = vrcp.pop %v840
    %v842 = vmul.f32 %v840, %v841
    %v843 = vsub.f32 1.0, %v842
    %v844 = vmul.f32 %v841, %v843
    %v845 = vadd.f32 %v841, %v844
    %vm846 = vweird.f32 %v840
    %vm847 = vweird.f32 %v841
    %vm848 = vmor %vm846, %vm847
    %v849 = vsel %vm848, %v841, %v845
    %v850 = vand.u32 2147483647, %v840
    %vm851 = vcmp.eq.f32.partialorder %v850, 8.507059e+37
    %v852 = vand.u32 %v840, 2147483648
    %v853 = vor.u32 1.1754944e-38, %v852
    %v854 = vsel %vm851, %v853, %v849
    %v855 = vmul.f32 1.0, %v854
    %v856 = vadd.f32 %v834, %v811
    %v857 = vxor.u32 %v856, 2147483648
    %v858 = vmul.f32 %v857, 1.442695
    %v859 = vpow.pop %v858
    %v860 = vadd.f32 %v859, 1.0
    %v861 = vrcp.pop %v860
    %v862 = vmul.f32 %v860, %v861
    %v863 = vsub.f32 1.0, %v862
    %v864 = vmul.f32 %v861, %v863
    %v865 = vadd.f32 %v861, %v864
    %vm866 = vweird.f32 %v860
    %vm867 = vweird.f32 %v861
    %vm868 = vmor %vm866, %vm867
    %v869 = vsel %vm868, %v861, %v865
    %v870 = vand.u32 2147483647, %v860
    %vm871 = vcmp.eq.f32.partialorder %v870, 8.507059e+37
    %v872 = vand.u32 %v860, 2147483648
    %v873 = vor.u32 1.1754944e-38, %v872
    %v874 = vsel %vm871, %v873, %v869
    %v875 = vmul.f32 1.0, %v874
    %v876 = vadd.f32 %v831, %v224
    %v877 = vmul.f32 %v855, %v876
    %v878 = vadd.f32 %v835, %v877
    %v879 = vtanh.pop %v878
    %v880 = vsub.f32 1.0, %v875
    %v881 = vmul.f32 %v880, %v879
    %v882 = vmul.f32 %v875, %v772
    %v883 = vadd.f32 %v881, %v882
    %884 = vmatpush.msra.mxu0 %v219
    %885 = vmatpush.msra.mxu0 %v216
    %886 = vmatpush.msra.mxu0 %v213
    %887 = vmatpush.msra.mxu0 %v210
    %888 = vmatpush.msra.mxu0 %v207
    %889 = vmatpush.msra.mxu0 %v204
    %890 = vmatpush.msra.mxu0 %v201
    %891 = vmatpush.msra.mxu0 %v198
    %892 = vmatpush.msra.mxu0 %v195
    %893 = vmatpush.msra.mxu0 %v192
    %894 = vmatpush.msra.mxu0 %v189
    %895 = vmatpush.msra.mxu0 %v186
    %896 = vmatpush.msra.mxu0 %v183
    %897 = vmatpush.msra.mxu0 %v180
    %898 = vmatpush.msra.mxu0 %v177
    %899 = vmatpush.msra.mxu0 %v174
    %900 = vmatmul.f32.gmra.mxu0 %v883
    %v901 = vpop.f32.mrf.mxu0
    %v902 = vadd.f32 0.0, %v901
    %903 = vdwg.mxu0
    %904 = vmatpush.msra.mxu0 %v220
    %905 = vmatpush.msra.mxu0 %v217
    %906 = vmatpush.msra.mxu0 %v214
    %907 = vmatpush.msra.mxu0 %v211
    %908 = vmatpush.msra.mxu0 %v208
    %909 = vmatpush.msra.mxu0 %v205
    %910 = vmatpush.msra.mxu0 %v202
    %911 = vmatpush.msra.mxu0 %v199
    %912 = vmatpush.msra.mxu0 %v196
    %913 = vmatpush.msra.mxu0 %v193
    %914 = vmatpush.msra.mxu0 %v190
    %915 = vmatpush.msra.mxu0 %v187
    %916 = vmatpush.msra.mxu0 %v184
    %917 = vmatpush.msra.mxu0 %v181
    %918 = vmatpush.msra.mxu0 %v178
    %919 = vmatpush.msra.mxu0 %v175
    %920 = vmatmul.f32.gmra.mxu0 %v883
    %v921 = vpop.f32.mrf.mxu0
    %v922 = vadd.f32 0.0, %v921
    %923 = vdwg.mxu0
    %924 = vmatpush.msra.mxu0 %v221
    %925 = vmatpush.msra.mxu0 %v218
    %926 = vmatpush.msra.mxu0 %v215
    %927 = vmatpush.msra.mxu0 %v212
    %928 = vmatpush.msra.mxu0 %v209
    %929 = vmatpush.msra.mxu0 %v206
    %930 = vmatpush.msra.mxu0 %v203
    %931 = vmatpush.msra.mxu0 %v200
    %932 = vmatpush.msra.mxu0 %v197
    %933 = vmatpush.msra.mxu0 %v194
    %934 = vmatpush.msra.mxu0 %v191
    %935 = vmatpush.msra.mxu0 %v188
    %936 = vmatpush.msra.mxu0 %v185
    %937 = vmatpush.msra.mxu0 %v182
    %938 = vmatpush.msra.mxu0 %v179
    %939 = vmatpush.msra.mxu0 %v176
    %940 = vmatmul.f32.gmra.mxu0 %v883
    %v941 = vpop.f32.mrf.mxu0
    %v942 = vadd.f32 0.0, %v941
    %943 = vdwg.mxu0
    %v944 = vsel %vm291, %v577, %v565
    %v945 = vsel %vm291, %v580, %v568
    %v946 = vsel %vm291, %v583, %v571
    %v947 = vadd.f32 %v944, %v902
    %v948 = vxor.u32 %v947, 2147483648
    %v949 = vmul.f32 %v948, 1.442695
    %v950 = vpow.pop %v949
    %v951 = vadd.f32 %v950, 1.0
    %v952 = vrcp.pop %v951
    %v953 = vmul.f32 %v951, %v952
    %v954 = vsub.f32 1.0, %v953
    %v955 = vmul.f32 %v952, %v954
    %v956 = vadd.f32 %v952, %v955
    %vm957 = vweird.f32 %v951
    %vm958 = vweird.f32 %v952
    %vm959 = vmor %vm957, %vm958
    %v960 = vsel %vm959, %v952, %v956
    %v961 = vand.u32 2147483647, %v951
    %vm962 = vcmp.eq.f32.partialorder %v961, 8.507059e+37
    %v963 = vand.u32 %v951, 2147483648
    %v964 = vor.u32 1.1754944e-38, %v963
    %v965 = vsel %vm962, %v964, %v960
    %v966 = vmul.f32 1.0, %v965
    %v967 = vadd.f32 %v945, %v922
    %v968 = vxor.u32 %v967, 2147483648
    %v969 = vmul.f32 %v968, 1.442695
    %v970 = vpow.pop %v969
    %v971 = vadd.f32 %v970, 1.0
    %v972 = vrcp.pop %v971
    %v973 = vmul.f32 %v971, %v972
    %v974 = vsub.f32 1.0, %v973
    %v975 = vmul.f32 %v972, %v974
    %v976 = vadd.f32 %v972, %v975
    %vm977 = vweird.f32 %v971
    %vm978 = vweird.f32 %v972
    %vm979 = vmor %vm977, %vm978
    %v980 = vsel %vm979, %v972, %v976
    %v981 = vand.u32 2147483647, %v971
    %vm982 = vcmp.eq.f32.partialorder %v981, 8.507059e+37
    %v983 = vand.u32 %v971, 2147483648
    %v984 = vor.u32 1.1754944e-38, %v983
    %v985 = vsel %vm982, %v984, %v980
    %v986 = vmul.f32 1.0, %v985
    %v987 = vadd.f32 %v942, %v224
    %v988 = vmul.f32 %v966, %v987
    %v989 = vadd.f32 %v946, %v988
    %v990 = vtanh.pop %v989
    %v991 = vsub.f32 1.0, %v986
    %v992 = vmul.f32 %v991, %v990
    %v993 = vmul.f32 %v986, %v883
    %v994 = vadd.f32 %v992, %v993
    %995 = vmatpush.msra.mxu0 %v219
    %996 = vmatpush.msra.mxu0 %v216
    %997 = vmatpush.msra.mxu0 %v213
    %998 = vmatpush.msra.mxu0 %v210
    %999 = vmatpush.msra.mxu0 %v207
    %1000 = vmatpush.msra.mxu0 %v204
    %1001 = vmatpush.msra.mxu0 %v201
    %1002 = vmatpush.msra.mxu0 %v198
    %1003 = vmatpush.msra.mxu0 %v195
    %1004 = vmatpush.msra.mxu0 %v192
    %1005 = vmatpush.msra.mxu0 %v189
    %1006 = vmatpush.msra.mxu0 %v186
    %1007 = vmatpush.msra.mxu0 %v183
    %1008 = vmatpush.msra.mxu0 %v180
    %1009 = vmatpush.msra.mxu0 %v177
    %1010 = vmatpush.msra.mxu0 %v174
    %1011 = vmatmul.f32.gmra.mxu0 %v994
    %v1012 = vpop.f32.mrf.mxu0
    %v1013 = vadd.f32 0.0, %v1012
    %1014 = vdwg.mxu0
    %1015 = vmatpush.msra.mxu0 %v220
    %1016 = vmatpush.msra.mxu0 %v217
    %1017 = vmatpush.msra.mxu0 %v214
    %1018 = vmatpush.msra.mxu0 %v211
    %1019 = vmatpush.msra.mxu0 %v208
    %1020 = vmatpush.msra.mxu0 %v205
    %1021 = vmatpush.msra.mxu0 %v202
    %1022 = vmatpush.msra.mxu0 %v199
    %1023 = vmatpush.msra.mxu0 %v196
    %1024 = vmatpush.msra.mxu0 %v193
    %1025 = vmatpush.msra.mxu0 %v190
    %1026 = vmatpush.msra.mxu0 %v187
    %1027 = vmatpush.msra.mxu0 %v184
    %1028 = vmatpush.msra.mxu0 %v181
    %1029 = vmatpush.msra.mxu0 %v178
    %1030 = vmatpush.msra.mxu0 %v175
    %1031 = vmatmul.f32.gmra.mxu0 %v994
    %v1032 = vpop.f32.mrf.mxu0
    %v1033 = vadd.f32 0.0, %v1032
    %1034 = vdwg.mxu0
    %1035 = vmatpush.msra.mxu0 %v221
    %1036 = vmatpush.msra.mxu0 %v218
    %1037 = vmatpush.msra.mxu0 %v215
    %1038 = vmatpush.msra.mxu0 %v212
    %1039 = vmatpush.msra.mxu0 %v209
    %1040 = vmatpush.msra.mxu0 %v206
    %1041 = vmatpush.msra.mxu0 %v203
    %1042 = vmatpush.msra.mxu0 %v200
    %1043 = vmatpush.msra.mxu0 %v197
    %1044 = vmatpush.msra.mxu0 %v194
    %1045 = vmatpush.msra.mxu0 %v191
    %1046 = vmatpush.msra.mxu0 %v188
    %1047 = vmatpush.msra.mxu0 %v185
    %1048 = vmatpush.msra.mxu0 %v182
    %1049 = vmatpush.msra.mxu0 %v179
    %1050 = vmatpush.msra.mxu0 %v176
    %1051 = vmatmul.f32.gmra.mxu0 %v994
    %v1052 = vpop.f32.mrf.mxu0
    %v1053 = vadd.f32 0.0, %v1052
    %1054 = vdwg.mxu0
    %v1055 = vsel %vm291, %v442, %v432
    %v1056 = vsel %vm291, %v445, %v434
    %v1057 = vsel %vm291, %v448, %v436
    %v1058 = vadd.f32 %v1055, %v1013
    %v1059 = vxor.u32 %v1058, 2147483648
    %v1060 = vmul.f32 %v1059, 1.442695
    %v1061 = vpow.pop %v1060
    %v1062 = vadd.f32 %v1061, 1.0
    %v1063 = vrcp.pop %v1062
    %v1064 = vmul.f32 %v1062, %v1063
    %v1065 = vsub.f32 1.0, %v1064
    %v1066 = vmul.f32 %v1063, %v1065
    %v1067 = vadd.f32 %v1063, %v1066
    %vm1068 = vweird.f32 %v1062
    %vm1069 = vweird.f32 %v1063
    %vm1070 = vmor %vm1068, %vm1069
    %v1071 = vsel %vm1070, %v1063, %v1067
    %v1072 = vand.u32 2147483647, %v1062
    %vm1073 = vcmp.eq.f32.partialorder %v1072, 8.507059e+37
    %v1074 = vand.u32 %v1062, 2147483648
    %v1075 = vor.u32 1.1754944e-38, %v1074
    %v1076 = vsel %vm1073, %v1075, %v1071
    %v1077 = vmul.f32 1.0, %v1076
    %v1078 = vadd.f32 %v1056, %v1033
    %v1079 = vxor.u32 %v1078, 2147483648
    %v1080 = vmul.f32 %v1079, 1.442695
    %v1081 = vpow.pop %v1080
    %v1082 = vadd.f32 %v1081, 1.0
    %v1083 = vrcp.pop %v1082
    %v1084 = vmul.f32 %v1082, %v1083
    %v1085 = vsub.f32 1.0, %v1084
    %v1086 = vmul.f32 %v1083, %v1085
    %v1087 = vadd.f32 %v1083, %v1086
    %vm1088 = vweird.f32 %v1082
    %vm1089 = vweird.f32 %v1083
    %vm1090 = vmor %vm1088, %vm1089
    %v1091 = vsel %vm1090, %v1083, %v1087
    %v1092 = vand.u32 2147483647, %v1082
    %vm1093 = vcmp.eq.f32.partialorder %v1092, 8.507059e+37
    %v1094 = vand.u32 %v1082, 2147483648
    %v1095 = vor.u32 1.1754944e-38, %v1094
    %v1096 = vsel %vm1093, %v1095, %v1091
    %v1097 = vmul.f32 1.0, %v1096
    %v1098 = vadd.f32 %v1053, %v224
    %v1099 = vmul.f32 %v1077, %v1098
    %v1100 = vadd.f32 %v1057, %v1099
    %v1101 = vtanh.pop %v1100
    %v1102 = vsub.f32 1.0, %v1097
    %v1103 = vmul.f32 %v1102, %v1101
    %v1104 = vmul.f32 %v1097, %v994
    %v1105 = vadd.f32 %v1103, %v1104
    %1106 = vmatpush.msra.mxu0 %v219
    %1107 = vmatpush.msra.mxu0 %v216
    %1108 = vmatpush.msra.mxu0 %v213
    %1109 = vmatpush.msra.mxu0 %v210
    %1110 = vmatpush.msra.mxu0 %v207
    %1111 = vmatpush.msra.mxu0 %v204
    %1112 = vmatpush.msra.mxu0 %v201
    %1113 = vmatpush.msra.mxu0 %v198
    %1114 = vmatpush.msra.mxu0 %v195
    %1115 = vmatpush.msra.mxu0 %v192
    %1116 = vmatpush.msra.mxu0 %v189
    %1117 = vmatpush.msra.mxu0 %v186
    %1118 = vmatpush.msra.mxu0 %v183
    %1119 = vmatpush.msra.mxu0 %v180
    %1120 = vmatpush.msra.mxu0 %v177
    %1121 = vmatpush.msra.mxu0 %v174
    %1122 = vmatmul.f32.gmra.mxu0 %v1105
    %v1123 = vpop.f32.mrf.mxu0
    %v1124 = vadd.f32 0.0, %v1123
    %1125 = vdwg.mxu0
    %1126 = vmatpush.msra.mxu0 %v220
    %1127 = vmatpush.msra.mxu0 %v217
    %1128 = vmatpush.msra.mxu0 %v214
    %1129 = vmatpush.msra.mxu0 %v211
    %1130 = vmatpush.msra.mxu0 %v208
    %1131 = vmatpush.msra.mxu0 %v205
    %1132 = vmatpush.msra.mxu0 %v202
    %1133 = vmatpush.msra.mxu0 %v199
    %1134 = vmatpush.msra.mxu0 %v196
    %1135 = vmatpush.msra.mxu0 %v193
    %1136 = vmatpush.msra.mxu0 %v190
    %1137 = vmatpush.msra.mxu0 %v187
    %1138 = vmatpush.msra.mxu0 %v184
    %1139 = vmatpush.msra.mxu0 %v181
    %1140 = vmatpush.msra.mxu0 %v178
    %1141 = vmatpush.msra.mxu0 %v175
    %1142 = vmatmul.f32.gmra.mxu0 %v1105
    %v1143 = vpop.f32.mrf.mxu0
    %v1144 = vadd.f32 0.0, %v1143
    %1145 = vdwg.mxu0
    %1146 = vmatpush.msra.mxu0 %v221
    %1147 = vmatpush.msra.mxu0 %v218
    %1148 = vmatpush.msra.mxu0 %v215
    %1149 = vmatpush.msra.mxu0 %v212
    %1150 = vmatpush.msra.mxu0 %v209
    %1151 = vmatpush.msra.mxu0 %v206
    %1152 = vmatpush.msra.mxu0 %v203
    %1153 = vmatpush.msra.mxu0 %v200
    %1154 = vmatpush.msra.mxu0 %v197
    %1155 = vmatpush.msra.mxu0 %v194
    %1156 = vmatpush.msra.mxu0 %v191
    %1157 = vmatpush.msra.mxu0 %v188
    %1158 = vmatpush.msra.mxu0 %v185
    %1159 = vmatpush.msra.mxu0 %v182
    %1160 = vmatpush.msra.mxu0 %v179
    %1161 = vmatpush.msra.mxu0 %v176
    %1162 = vmatmul.f32.gmra.mxu0 %v1105
    %v1163 = vpop.f32.mrf.mxu0
    %v1164 = vadd.f32 0.0, %v1163
    %1165 = vdwg.mxu0
    %v1166 = vsel %vm291, %v310, %v300
    %v1167 = vsel %vm291, %v313, %v302
    %v1168 = vsel %vm291, %v316, %v304
    %v1169 = vadd.f32 %v1166, %v1124
    %v1170 = vxor.u32 %v1169, 2147483648
    %v1171 = vmul.f32 %v1170, 1.442695
    %v1172 = vpow.pop %v1171
    %v1173 = vadd.f32 %v1172, 1.0
    %v1174 = vrcp.pop %v1173
    %v1175 = vmul.f32 %v1173, %v1174
    %v1176 = vsub.f32 1.0, %v1175
    %v1177 = vmul.f32 %v1174, %v1176
    %v1178 = vadd.f32 %v1174, %v1177
    %vm1179 = vweird.f32 %v1173
    %vm1180 = vweird.f32 %v1174
    %vm1181 = vmor %vm1179, %vm1180
    %v1182 = vsel %vm1181, %v1174, %v1178
    %v1183 = vand.u32 2147483647, %v1173
    %vm1184 = vcmp.eq.f32.partialorder %v1183, 8.507059e+37
    %v1185 = vand.u32 %v1173, 2147483648
    %v1186 = vor.u32 1.1754944e-38, %v1185
    %v1187 = vsel %vm1184, %v1186, %v1182
    %v1188 = vmul.f32 1.0, %v1187
    %v1189 = vadd.f32 %v1167, %v1144
    %v1190 = vxor.u32 %v1189, 2147483648
    %v1191 = vmul.f32 %v1190, 1.442695
    %v1192 = vpow.pop %v1191
    %v1193 = vadd.f32 %v1192, 1.0
    %v1194 = vrcp.pop %v1193
    %v1195 = vmul.f32 %v1193, %v1194
    %v1196 = vsub.f32 1.0, %v1195
    %v1197 = vmul.f32 %v1194, %v1196
    %v1198 = vadd.f32 %v1194, %v1197
    %vm1199 = vweird.f32 %v1193
    %vm1200 = vweird.f32 %v1194
    %vm1201 = vmor %vm1199, %vm1200
    %v1202 = vsel %vm1201, %v1194, %v1198
    %v1203 = vand.u32 2147483647, %v1193
    %vm1204 = vcmp.eq.f32.partialorder %v1203, 8.507059e+37
    %v1205 = vand.u32 %v1193, 2147483648
    %v1206 = vor.u32 1.1754944e-38, %v1205
    %v1207 = vsel %vm1204, %v1206, %v1202
    %v1208 = vmul.f32 1.0, %v1207
    %v1209 = vadd.f32 %v1164, %v224
    %v1210 = vmul.f32 %v1188, %v1209
    %v1211 = vadd.f32 %v1168, %v1210
    %v1212 = vtanh.pop %v1211
    %v1213 = vsub.f32 1.0, %v1208
    %v1214 = vmul.f32 %v1213, %v1212
    %v1215 = vmul.f32 %v1208, %v1105
    %v1216 = vadd.f32 %v1214, %v1215
    %v1218 = vrot.slane %v370, 1
    %v1221 = vrot.slane %v502, 1
    %v1223 = vrot.slane %v637, 1
    %v1225 = vrot.slane %v772, 1
    %v1227 = vrot.slane %v883, 1
    %v1229 = vrot.slane %v994, 1
    %v1231 = vrot.slane %v1105, 1
    %v1233 = vrot.slane %v1216, 1
    %v1235 = vperm.slane %v502, 0
    %v1236 = vperm.slane %v1221, 0
    %v1239 = vperm.slane %v637, 0
    %v1240 = vperm.slane %v1223, 0
    %v1243 = vperm.slane %v772, 0
    %v1244 = vperm.slane %v1225, 0
    %v1247 = vperm.slane %v883, 0
    %v1248 = vperm.slane %v1227, 0
    %v1251 = vperm.slane %v994, 0
    %v1252 = vperm.slane %v1229, 0
    %v1255 = vperm.slane %v1105, 0
    %v1256 = vperm.slane %v1231, 0
    %v1259 = vperm.slane %v1216, 0
    %v1260 = vperm.slane %v1233, 0
    %vm1263 = vcmask 1040384
    %v1264 = vsel %vm1263, %v370, %v1235
    %v1265 = vsel %vm1263, %v1218, %v1236
    %vm1266 = vcmask 1041408
    %v1267 = vsel %vm1266, %v1264, %v1239
    %v1268 = vsel %vm1266, %v1265, %v1240
    %vm1269 = vcmask 1042432
    %v1270 = vsel %vm1269, %v1267, %v1243
    %v1271 = vsel %vm1269, %v1268, %v1244
    %vm1272 = vcmask 1043456
    %v1273 = vsel %vm1272, %v1270, %v1247
    %v1274 = vsel %vm1272, %v1271, %v1248
    %vm1275 = vcmask 1044480
    %v1276 = vsel %vm1275, %v1273, %v1251
    %v1277 = vsel %vm1275, %v1274, %v1252
    %vm1278 = vcmask 1045504
    %v1279 = vsel %vm1278, %v1276, %v1255
    %v1280 = vsel %vm1278, %v1277, %v1256
    %vm1281 = vcmask 1046528
    %v1282 = vsel %vm1281, %v1279, %v1259
    %v1283 = vsel %vm1281, %v1280, %v1260
    %v1284 = vperm.slane %v370, 0
    %v1285 = vperm.slane %v1218, 0
    %v1288 = vsel %vm1263, %v1216, %v1255
    %v1289 = vsel %vm1263, %v1233, %v1256
    %v1290 = vsel %vm1266, %v1288, %v1251
    %v1291 = vsel %vm1266, %v1289, %v1252
    %v1292 = vsel %vm1269, %v1290, %v1247
    %v1293 = vsel %vm1269, %v1291, %v1248
    %v1294 = vsel %vm1272, %v1292, %v1243
    %v1295 = vsel %vm1272, %v1293, %v1244
    %v1296 = vsel %vm1275, %v1294, %v1239
    %v1297 = vsel %vm1275, %v1295, %v1240
    %v1298 = vsel %vm1278, %v1296, %v1235
    %v1299 = vsel %vm1278, %v1297, %v1236
    %v1300 = vsel %vm1281, %v1298, %v1284
    %v1301 = vsel %vm1281, %v1299, %v1285
    %vm1302 = vcmp.eq.s32.totalorder %v289, 1
    %v1303 = vsel %vm1302, %v1282, %v1300
    %v1304 = vsel %vm1302, %v1283, %v1301
    %1305 = vst [vmem:[%s5] sm:$0xff] %v1303
    %1306 = vst [vmem:[%s5 + $0x8] sm:$0xff] %v1304
    // Predicated region
    $region26: #{forward.2} parent=1 // pred_check
      _
    $region27: #{forward.2} parent=1 // pred_check_branch
      %1308 = sbr.rel (0) target = $region29
    $region28: #{forward.2} parent=1 // pred_region
      _
    $region29: #{forward.2} parent=1 // pred_fallthru
      _
    // Predicated region
    $region30: #{forward.2} parent=1 // pred_check
      _
    $region31: #{forward.2} parent=1 // pred_check_branch
      %1310 = sbr.rel (0) target = $region33
    $region32: #{forward.2} parent=1 // pred_region
      _
    $region33: #{forward.2} parent=1 // pred_fallthru
      _
    %1311 = vsyncpa [#allocation3], 1

</llo_original>
